<compile_context>
chip_gen: v6e
topology: v6e:2x2x1
jax: 0.10.0
libtpu: 0.0.40
codegen_flags: <defaults>
</compile_context>

<pallas_src>
import math

import jax
import jax.numpy as jnp
from jax import lax
from jax.experimental import pallas as pl
from jax.experimental.pallas import tpu as pltpu


def _choose_block(dim, preferred, align):
    """Largest tile <= `preferred` that divides `dim` and is a multiple of
    `align`; falls back to the full extent (always a legal block shape)."""
    if dim <= preferred:
        return dim
    t = (preferred // align) * align
    while t >= align:
        if dim % t == 0:
            return t
        t -= align
    return dim


def _make_flash_kernel(scale, has_mask):
    def kernel(*refs):
        if has_mask:
            q_ref, k_ref, v_ref, mask_ref, o_ref, m_sc, l_sc, acc_sc = refs
        else:
            q_ref, k_ref, v_ref, o_ref, m_sc, l_sc, acc_sc = refs
            mask_ref = None

        ki = pl.program_id(3)

        @pl.when(ki == 0)
        def _init():
            m_sc[...] = jnp.full(m_sc.shape, -jnp.inf, dtype=jnp.float32)
            l_sc[...] = jnp.zeros(l_sc.shape, dtype=jnp.float32)
            acc_sc[...] = jnp.zeros(acc_sc.shape, dtype=jnp.float32)

        # Native-dtype operands into the MXU, f32 accumulate.  Fold the
        # 1/sqrt(D) scale into q (cheaper than scaling the (tq, tk) scores).
        q = q_ref[0, 0] * jnp.asarray(scale, dtype=q_ref.dtype)        # (tq, D)
        k = k_ref[0, 0]                                                # (tk, D)

        # scores = q @ k^T without an explicit transpose.
        s = lax.dot_general(
            q, k,
            dimension_numbers=(((1,), (1,)), ((), ())),
            preferred_element_type=jnp.float32)                        # (tq, tk)

        if has_mask:
            # mask_ref block is (1, 1, {1|tq}, {1|tk}); jnp.where broadcasts
            # it against (tq, tk) for free (VPU select).  Matches torch
            # masked_fill(mask == 0, -1e9): fully-masked rows degrade to
            # uniform attention, same as the reference.
            mblk = mask_ref[0, 0]                                      # (mq, mk)
            s = jnp.where(mblk == 0, jnp.float32(-1e9), s)

        # Online (flash) softmax update, all in f32.
        m_prev = m_sc[...]
        m_new = jnp.maximum(m_prev, jnp.max(s, axis=-1, keepdims=True))
        alpha = jnp.exp(m_prev - m_new)
        p = jnp.exp(s - m_new)                                         # (tq, tk)
        l_sc[...] = alpha * l_sc[...] + jnp.sum(p, axis=-1, keepdims=True)
        acc_sc[...] = alpha * acc_sc[...] + jnp.dot(
            p.astype(v_ref.dtype), v_ref[0, 0],
            preferred_element_type=jnp.float32)                        # (tq, D)
        m_sc[...] = m_new

        @pl.when(ki == pl.num_programs(3) - 1)
        def _finalize():
            inv_l = pl.reciprocal(l_sc[...], approx=True)              # EUP slot
            o_ref[0, 0] = (acc_sc[...] * inv_l).astype(o_ref.dtype)

    return kernel


def _mask_blockspec(mask_shape, tq, tk):
    """BlockSpec for a mask kept at its natural (broadcastable) extent.
    Size-1 dims get block 1 and index 0; no HBM broadcast ever happens."""
    mB, mH, mQ, mK = mask_shape
    bq = tq if mQ != 1 else 1
    bk = tk if mK != 1 else 1

    def idx(b, h, qi, ki):
        return ((b if mB != 1 else 0),
                (h if mH != 1 else 0),
                (qi if mQ != 1 else 0),
                (ki if mK != 1 else 0))

    return pl.BlockSpec((1, 1, bq, bk), idx), bq, bk


def scaled_dot_product_attention(q, k, v, mask=None, *, block_q=256, block_kv=256):
    """q, k, v: [B, H, S, D]; mask: None or broadcastable to [B, H, S, S]."""
    B, H, S, D = q.shape
    scale = 1.0 / math.sqrt(D)

    # Tile sizes: ~256 keeps VMEM / vreg pressure modest across v5e/v6e/v7x;
    # kv tiles are multiples of 128 so the scores / mask blocks are lane-aligned.
    tq = _choose_block(S, block_q, 8)
    tk = _choose_block(S, block_kv, 128)
    nq = S // tq
    nkv = S // tk

    q_spec = pl.BlockSpec((1, 1, tq, D), lambda b, h, qi, ki: (b, h, qi, 0))
    kv_spec = pl.BlockSpec((1, 1, tk, D), lambda b, h, qi, ki: (b, h, ki, 0))
    out_spec = pl.BlockSpec((1, 1, tq, D), lambda b, h, qi, ki: (b, h, qi, 0))

    in_specs = [q_spec, kv_spec, kv_spec]
    call_args = [q, k, v]
    has_mask = mask is not None
    mask_bytes = 0

    if has_mask:
        m = jnp.asarray(mask)
        if m.ndim < 4:
            m = m.reshape((1,) * (4 - m.ndim) + m.shape)
        # (mask != 0) preserves torch masked_fill(mask == 0, ...) semantics
        # for any mask dtype (bool / int / float).  int32 keeps VMEM layout
        # simple.  No broadcast in HBM — kept at natural extent.
        m_i32 = (m != 0).astype(jnp.int32)
        mask_spec, mbq, mbk = _mask_blockspec(m_i32.shape, tq, tk)
        in_specs.append(mask_spec)
        call_args.append(m_i32)
        mask_bytes = 2 * mbq * mbk * 4                      # double-buffered i32

    # Explicit VMEM budget: double-buffered q/k/v/out (+mask) + f32 scratch.
    itemsize = q.dtype.itemsize
    est = 2 * (tq * D + 2 * tk * D + tq * D) * itemsize
    est += mask_bytes
    est += tq * D * 4 + 2 * tq * 128 * 4                    # acc + (m_i, l_i) lane-padded
    est += tq * tk * 4                                      # in-flight scores tile
    vmem_limit = int(min(max(3 * est, 16 << 20), 48 << 20))

    cparams = pltpu.CompilerParams(
        dimension_semantics=("parallel", "parallel", "parallel", "arbitrary"),
        vmem_limit_bytes=vmem_limit)

    out = pl.pallas_call(
        _make_flash_kernel(scale, has_mask),
        out_shape=jax.ShapeDtypeStruct((B, H, S, D), q.dtype),
        grid_spec=pltpu.PrefetchScalarGridSpec(
            num_scalar_prefetch=0,
            grid=(B, H, nq, nkv),
            in_specs=in_specs,
            out_specs=out_spec,
            scratch_shapes=[
                pltpu.VMEM((tq, 1), jnp.float32),          # running max  m_i
                pltpu.VMEM((tq, 1), jnp.float32),          # running sum  l_i
                pltpu.VMEM((tq, D), jnp.float32),          # output accumulator
            ]),
        compiler_params=cparams,
    )(*call_args)
    return out


def _reference(q, k, v, mask=None):
    scale = 1.0 / math.sqrt(k.shape[-1])
    scores = jnp.einsum("bhqd,bhkd->bhqk",
                        q.astype(jnp.float32), k.astype(jnp.float32)) * scale
    if mask is not None:
        scores = jnp.where(mask == 0, -1e9, scores)
    probs = jax.nn.softmax(scores, axis=-1)
    out = jnp.einsum("bhqk,bhkd->bhqd", probs, v.astype(jnp.float32))
    return out.astype(q.dtype)


if __name__ == "__main__":
    B, H, S, D = 2, 4, 256, 32
    key = jax.random.PRNGKey(0)
    kq, kk, kv, kp = jax.random.split(key, 4)
    q = jax.random.normal(kq, (B, H, S, D), dtype=jnp.float32)
    k = jax.random.normal(kk, (B, H, S, D), dtype=jnp.float32)
    v = jax.random.normal(kv, (B, H, S, D), dtype=jnp.float32)

    # (1, 1, S, S) causal mask and a (B, 1, 1, S) key-padding mask.
    causal = jnp.tril(jnp.ones((1, 1, S, S), dtype=jnp.int32))
    key_pad = (jax.random.uniform(kp, (B, 1, 1, S)) > 0.2).astype(jnp.int32)

    out_nomask = scaled_dot_product_attention(q, k, v)
    out_causal = scaled_dot_product_attention(q, k, v, mask=causal,
                                              block_q=64, block_kv=128)
    out_keypad = scaled_dot_product_attention(q, k, v, mask=key_pad,
                                              block_q=128, block_kv=128)
    jax.block_until_ready((out_nomask, out_causal, out_keypad))

    ref_nomask = _reference(q, k, v)
    ref_causal = _reference(q, k, v, causal)
    ref_keypad = _reference(q, k, v, key_pad)

    assert out_nomask.shape == (B, H, S, D)
    assert jnp.allclose(out_nomask, ref_nomask, atol=2e-3, rtol=2e-3)
    assert jnp.allclose(out_causal, ref_causal, atol=2e-3, rtol=2e-3)
    assert jnp.allclose(out_keypad, ref_keypad, atol=2e-3, rtol=2e-3)

    print("KERNEL_OK")
</pallas_src>

<mosaic_0001>
module attributes {stable_mosaic.version = 11 : i64} {
  func.func @kernel(%arg0: i32, %arg1: i32, %arg2: i32, %arg3: i32, %arg4: memref<1x1x256x32xf32, #tpu.memory_space<vmem>>, %arg5: memref<1x1x256x32xf32, #tpu.memory_space<vmem>>, %arg6: memref<1x1x256x32xf32, #tpu.memory_space<vmem>>, %arg7: memref<1x1x256x32xf32, #tpu.memory_space<vmem>>, %arg8: memref<256x1xf32, #tpu.memory_space<vmem>>, %arg9: memref<256x1xf32, #tpu.memory_space<vmem>>, %arg10: memref<256x32xf32, #tpu.memory_space<vmem>>) attributes {dimension_semantics = [#tpu.dimension_semantics<parallel>, #tpu.dimension_semantics<parallel>, #tpu.dimension_semantics<parallel>, #tpu.dimension_semantics<arbitrary>], iteration_bounds = array<i64: 2, 4, 1, 1>, scalar_prefetch = 0 : i64, scratch_operands = 3 : i64, tpu.core_type = #tpu.core_type<tc>, window_params = [{transform_indices = @transform_0, window_bounds = array<i64: 1, 1, 256, 32>}, {transform_indices = @transform_1, window_bounds = array<i64: 1, 1, 256, 32>}, {transform_indices = @transform_2, window_bounds = array<i64: 1, 1, 256, 32>}, {transform_indices = @transform_3, window_bounds = array<i64: 1, 1, 256, 32>}]} {
    %c0_i32 = arith.constant 0 : i32
    %0 = arith.cmpi eq, %arg3, %c0_i32 : i32
    %1 = arith.extui %0 : i1 to i32
    %c0_i32_0 = arith.constant 0 : i32
    %2 = arith.cmpi ne, %1, %c0_i32_0 : i32
    scf.if %2 {
      %cst_30 = arith.constant 0xFF800000 : f32
      %37 = vector.broadcast %cst_30 : f32 to vector<256x1xf32>
      %c0_31 = arith.constant 0 : index
      %c0_32 = arith.constant 0 : index
      %38 = vector.load %arg8[%c0_31, %c0_32] : memref<256x1xf32, #tpu.memory_space<vmem>>, vector<256x1xf32>
      tpu.vector_store %arg8[%c0_31, %c0_32], %37 {strides = array<i32>} : memref<256x1xf32, #tpu.memory_space<vmem>>, vector<256x1xf32>,
      %cst_33 = arith.constant 0.000000e+00 : f32
      %39 = vector.broadcast %cst_33 : f32 to vector<256x1xf32>
      %c0_34 = arith.constant 0 : index
      %c0_35 = arith.constant 0 : index
      %40 = vector.load %arg9[%c0_34, %c0_35] : memref<256x1xf32, #tpu.memory_space<vmem>>, vector<256x1xf32>
      tpu.vector_store %arg9[%c0_34, %c0_35], %39 {strides = array<i32>} : memref<256x1xf32, #tpu.memory_space<vmem>>, vector<256x1xf32>,
      %cst_36 = arith.constant 0.000000e+00 : f32
      %41 = vector.broadcast %cst_36 : f32 to vector<256x32xf32>
      %c0_37 = arith.constant 0 : index
      %c0_38 = arith.constant 0 : index
      %42 = vector.load %arg10[%c0_37, %c0_38] : memref<256x32xf32, #tpu.memory_space<vmem>>, vector<256x32xf32>
      tpu.vector_store %arg10[%c0_37, %c0_38], %41 {strides = array<i32>} : memref<256x32xf32, #tpu.memory_space<vmem>>, vector<256x32xf32>,
    } else {
    }
    %c0 = arith.constant 0 : index
    %c0_1 = arith.constant 0 : index
    %c0_2 = arith.constant 0 : index
    %c0_3 = arith.constant 0 : index
    %3 = vector.load %arg4[%c0, %c0_1, %c0_2, %c0_3] : memref<1x1x256x32xf32, #tpu.memory_space<vmem>>, vector<1x1x256x32xf32>
    %4 = vector.shape_cast %3 : vector<1x1x256x32xf32> to vector<256x32xf32>
    %cst = arith.constant 0.176776692 : f32
    %5 = vector.broadcast %cst : f32 to vector<256x32xf32>
    %6 = arith.mulf %4, %5 : vector<256x32xf32>
    %c0_4 = arith.constant 0 : index
    %c0_5 = arith.constant 0 : index
    %c0_6 = arith.constant 0 : index
    %c0_7 = arith.constant 0 : index
    %7 = vector.load %arg5[%c0_4, %c0_5, %c0_6, %c0_7] : memref<1x1x256x32xf32, #tpu.memory_space<vmem>>, vector<1x1x256x32xf32>
    %8 = vector.shape_cast %7 : vector<1x1x256x32xf32> to vector<256x32xf32>
    %cst_8 = arith.constant dense<0.000000e+00> : vector<256x256xf32>
    %9 = tpu.matmul %6, %8, %cst_8 {dimension_numbers = #tpu.dot_dimension_numbers<[1], [1], [0], [0], [0, 0, 1, 0], [], []>} : vector<256x32xf32>, vector<256x32xf32>, vector<256x256xf32> -> vector<256x256xf32>
    %c0_9 = arith.constant 0 : index
    %c0_10 = arith.constant 0 : index
    %10 = vector.load %arg8[%c0_9, %c0_10] : memref<256x1xf32, #tpu.memory_space<vmem>>, vector<256x1xf32>
    %cst_11 = arith.constant dense<0xFF800000> : vector<256xf32>
    %11 = vector.multi_reduction <maximumf>, %9, %cst_11 [1] : vector<256x256xf32> to vector<256xf32>
    %12 = vector.shape_cast %11 : vector<256xf32> to vector<256x1xf32>
    %13 = arith.maximumf %10, %12 : vector<256x1xf32>
    %14 = arith.subf %10, %13 : vector<256x1xf32>
    %15 = math.exp %14 : vector<256x1xf32>
    %16 = vector.broadcast %13 : vector<256x1xf32> to vector<256x256xf32>
    %17 = arith.subf %9, %16 : vector<256x256xf32>
    %18 = math.exp %17 : vector<256x256xf32>
    %c0_12 = arith.constant 0 : index
    %c0_13 = arith.constant 0 : index
    %19 = vector.load %arg9[%c0_12, %c0_13] : memref<256x1xf32, #tpu.memory_space<vmem>>, vector<256x1xf32>
    %20 = arith.mulf %15, %19 : vector<256x1xf32>
    %cst_14 = arith.constant dense<0.000000e+00> : vector<256xf32>
    %21 = vector.multi_reduction <add>, %18, %cst_14 [1] : vector<256x256xf32> to vector<256xf32>
    %22 = vector.shape_cast %21 : vector<256xf32> to vector<256x1xf32>
    %23 = arith.addf %20, %22 : vector<256x1xf32>
    %c0_15 = arith.constant 0 : index
    %c0_16 = arith.constant 0 : index
    %24 = vector.load %arg9[%c0_15, %c0_16] : memref<256x1xf32, #tpu.memory_space<vmem>>, vector<256x1xf32>
    tpu.vector_store %arg9[%c0_15, %c0_16], %23 {strides = array<i32>} : memref<256x1xf32, #tpu.memory_space<vmem>>, vector<256x1xf32>,
    %c0_17 = arith.constant 0 : index
    %c0_18 = arith.constant 0 : index
    %25 = vector.load %arg10[%c0_17, %c0_18] : memref<256x32xf32, #tpu.memory_space<vmem>>, vector<256x32xf32>
    %26 = vector.broadcast %15 : vector<256x1xf32> to vector<256x32xf32>
    %27 = arith.mulf %26, %25 : vector<256x32xf32>
    %c0_19 = arith.constant 0 : index
    %c0_20 = arith.constant 0 : index
    %c0_21 = arith.constant 0 : index
    %c0_22 = arith.constant 0 : index
    %28 = vector.load %arg6[%c0_19, %c0_20, %c0_21, %c0_22] : memref<1x1x256x32xf32, #tpu.memory_space<vmem>>, vector<1x1x256x32xf32>
    %29 = vector.shape_cast %28 : vector<1x1x256x32xf32> to vector<256x32xf32>
    %cst_23 = arith.constant dense<0.000000e+00> : vector<256x32xf32>
    %30 = tpu.matmul %18, %29, %cst_23 {dimension_numbers = #tpu.dot_dimension_numbers<[1], [0], [0], [1], [0, 0, 1, 1], [], []>} : vector<256x256xf32>, vector<256x32xf32>, vector<256x32xf32> -> vector<256x32xf32>
    %31 = arith.addf %27, %30 : vector<256x32xf32>
    %c0_24 = arith.constant 0 : index
    %c0_25 = arith.constant 0 : index
    %32 = vector.load %arg10[%c0_24, %c0_25] : memref<256x32xf32, #tpu.memory_space<vmem>>, vector<256x32xf32>
    tpu.vector_store %arg10[%c0_24, %c0_25], %31 {strides = array<i32>} : memref<256x32xf32, #tpu.memory_space<vmem>>, vector<256x32xf32>,
    %c0_26 = arith.constant 0 : index
    %c0_27 = arith.constant 0 : index
    %33 = vector.load %arg8[%c0_26, %c0_27] : memref<256x1xf32, #tpu.memory_space<vmem>>, vector<256x1xf32>
    tpu.vector_store %arg8[%c0_26, %c0_27], %13 {strides = array<i32>} : memref<256x1xf32, #tpu.memory_space<vmem>>, vector<256x1xf32>,
    %c0_i32_28 = arith.constant 0 : i32
    %34 = arith.cmpi eq, %arg3, %c0_i32_28 : i32
    %35 = arith.extui %34 : i1 to i32
    %c0_i32_29 = arith.constant 0 : i32
    %36 = arith.cmpi ne, %35, %c0_i32_29 : i32
    scf.if %36 {
      %c0_30 = arith.constant 0 : index
      %c0_31 = arith.constant 0 : index
      %37 = vector.load %arg9[%c0_30, %c0_31] : memref<256x1xf32, #tpu.memory_space<vmem>>, vector<256x1xf32>
      %38 = tpu.reciprocal %37 {approx = true} : vector<256x1xf32> -> vector<256x1xf32>
      %c0_32 = arith.constant 0 : index
      %c0_33 = arith.constant 0 : index
      %39 = vector.load %arg10[%c0_32, %c0_33] : memref<256x32xf32, #tpu.memory_space<vmem>>, vector<256x32xf32>
      %40 = vector.broadcast %38 : vector<256x1xf32> to vector<256x32xf32>
      %41 = arith.mulf %39, %40 : vector<256x32xf32>
      %c0_34 = arith.constant 0 : index
      %c0_35 = arith.constant 0 : index
      %c0_36 = arith.constant 0 : index
      %c0_37 = arith.constant 0 : index
      %42 = vector.load %arg7[%c0_34, %c0_35, %c0_36, %c0_37] : memref<1x1x256x32xf32, #tpu.memory_space<vmem>>, vector<1x1x256x32xf32>
      %43 = vector.shape_cast %42 : vector<1x1x256x32xf32> to vector<256x32xf32>
      %44 = vector.shape_cast %41 : vector<256x32xf32> to vector<1x1x256x32xf32>
      tpu.vector_store %arg7[%c0_34, %c0_35, %c0_36, %c0_37], %44 {strides = array<i32>} : memref<1x1x256x32xf32, #tpu.memory_space<vmem>>, vector<1x1x256x32xf32>,
    } else {
    }
    return
  }
  func.func @transform_0(%arg0: i32, %arg1: i32, %arg2: i32, %arg3: i32) -> (i32, i32, i32, i32) {
    %c0_i32 = arith.constant 0 : i32
    %c0_i32_0 = arith.constant 0 : i32
    return %arg0, %arg1, %arg2, %c0_i32 : i32, i32, i32, i32
  }
  func.func @transform_1(%arg0: i32, %arg1: i32, %arg2: i32, %arg3: i32) -> (i32, i32, i32, i32) {
    %c0_i32 = arith.constant 0 : i32
    %c0_i32_0 = arith.constant 0 : i32
    return %arg0, %arg1, %arg3, %c0_i32 : i32, i32, i32, i32
  }
  func.func @transform_2(%arg0: i32, %arg1: i32, %arg2: i32, %arg3: i32) -> (i32, i32, i32, i32) {
    %c0_i32 = arith.constant 0 : i32
    %c0_i32_0 = arith.constant 0 : i32
    return %arg0, %arg1, %arg3, %c0_i32 : i32, i32, i32, i32
  }
  func.func @transform_3(%arg0: i32, %arg1: i32, %arg2: i32, %arg3: i32) -> (i32, i32, i32, i32) {
    %c0_i32 = arith.constant 0 : i32
    %c0_i32_0 = arith.constant 0 : i32
    return %arg0, %arg1, %arg2, %c0_i32 : i32, i32, i32, i32
  }
}

</mosaic_0001>

<llo_original>
// kernel: tpu_custom_call.1
$region0: #{tpu_custom_call.1}
  #allocation0 [shape = 'u32[]', space=smem, size = 0x4, offset = 0x4, fixed_abs, tag = 'smem constant byte address 0x4 - core index']
  #allocation1 [shape = 'u32[144,128]{1,0:T(1,128)}', space=vmem, size = 0x12000, scoped, tag = 'internal scratch']
  #allocation2 [shape = 'f32[256,1]{1,0:T(8,128)}', space=vmem, size = 0x20000, scoped, tag = 'scratch operand']
  #allocation3 [shape = 'f32[256,1]{1,0:T(8,128)}', space=vmem, size = 0x20000, scoped, tag = 'scratch operand']
  #allocation4 [shape = 'f32[256,32]{1,0:T(8,128)}', space=vmem, size = 0x20000, scoped, tag = 'scratch operand']
  %s0 = inlined_call_operand.vmem [shape: f32[2,4,256,32], index: 0, kind: input, shape index: {}]
  %s1 = inlined_call_operand.vmem [shape: f32[2,4,256,32], index: 1, kind: input, shape index: {}]
  %s2 = inlined_call_operand.vmem [shape: f32[2,4,256,32], index: 2, kind: input, shape index: {}]
  %s3 = inlined_call_operand.vmem [shape: f32[2,4,256,32], index: 3, kind: output, shape index: {}]
  %s4 = sld [smem:[#allocation0]]
  $region53: #{tpu_custom_call.1} parent=0
    _
  %s6 = ssub.s32 1, %s4
  %s7 = scalar_select 0, %s6, %s4
  loop: start=0, step=1, limit=10
  $region2: #{tpu_custom_call.1} parent=0 // loop_pre_header
    _
  $region3: #{tpu_custom_call.1} parent=0 // loop_header
    %s9 = sphi 0, %s13
    %p10 = scmp.ge.s32.totalorder %s9, 10
    %s16 = sphi 0, %s42
    %s17 = sphi 0, %s38
    %s18 = sphi 0, %s34
    %s19 = sphi 0, %s30
    %s20 = sphi 0, %s16
    %s21 = sphi 0, %s17
    %s22 = sphi 0, %s18
    %s23 = sphi 0, %s19
    %s24 = sphi 0, %s20
    %s25 = sphi 0, %s21
    %s26 = sphi 0, %s22
    %s27 = sphi 0, %s23
    %s49 = sphi 0, %s51
    %s52 = sphi 0, %s49
    %s53 = sphi 0, %s52
    %s69 = sphi 0, %s53
    %s79 = sphi 0, %s81
    %s82 = sphi 0, %s79
    %s83 = sphi 0, %s82
    %s99 = sphi 0, %s83
    %s109 = sphi 0, %s111
    %s112 = sphi 0, %s109
    %s113 = sphi 0, %s112
    %s129 = sphi 0, %s113
    %s139 = sphi 0, %s141
    %s142 = sphi 0, %s139
    %s143 = sphi 0, %s142
    %s159 = sphi 0, %s143
  $region4: #{tpu_custom_call.1} parent=0 // loop_header_branch
    %12 = sbr.rel (%p10) target = $region8
  $region5: #{tpu_custom_call.1} parent=0 // loop_body
    %s14 = ssub.s32 %s9, 1
    %s15 = ssub.s32 %s9, 2
    %s28 = sadd.s32 1, %s19
    %p29 = scmp.ge.s32.totalorder %s28, 1
    %s30 = scalar_select %p29, 0, %s28
    %s31 = sadd.s32 1, %s18
    %s32 = scalar_select %p29, %s31, %s18
    %p33 = scmp.ge.s32.totalorder %s32, 1
    %s34 = scalar_select %p33, 0, %s32
    %s35 = sadd.s32 1, %s17
    %s36 = scalar_select %p33, %s35, %s17
    %p37 = scmp.ge.s32.totalorder %s36, 4
    %s38 = scalar_select %p37, 0, %s36
    %s39 = sadd.s32 1, %s16
    %s40 = scalar_select %p37, %s39, %s16
    %p41 = scmp.ge.s32.totalorder %s40, 2
    %s42 = scalar_select %p41, 0, %s40
    %s43 = ssub.s32 %s16, %s42
    %s44 = ssub.s32 %s17, %s38
    %s45 = sor.u32 %s43, %s44
    %s46 = ssub.s32 %s18, %s34
    %s47 = sor.u32 %s45, %s46
    %p48 = scmp.eq.s32.totalorder %s47, 0
    %s50 = sadd.s32 %s49, 1
    %s51 = scalar_select %p48, %s49, %s50
    %p54 = pneg %p48
    %p55 = scmp.eq.s32.totalorder %s9, 7
    %p56 = por %p54, %p55
    %p57 = scmp.ne.s32.totalorder %s49, %s52
    %p58 = scmp.eq.s32.totalorder %s9, 0
    %p59 = por %p57, %p58
    %p60 = scmp.ne.s32.totalorder %s49, %s52
    %p61 = scmp.eq.s32.totalorder %s14, 7
    %p62 = por %p60, %p61
    %p63 = scmp.ne.s32.totalorder %s52, %s53
    %p64 = scmp.eq.s32.totalorder %s14, 0
    %p65 = por %p63, %p64
    %p66 = scmp.ne.s32.totalorder %s52, %s53
    %p67 = scmp.eq.s32.totalorder %s15, 7
    %p68 = por %p66, %p67
    %p70 = scmp.ne.s32.totalorder %s53, %s69
    %p71 = scmp.eq.s32.totalorder %s15, 0
    %p72 = por %p70, %p71
    %s73 = ssub.s32 %s16, %s42
    %s74 = ssub.s32 %s17, %s38
    %s75 = sor.u32 %s73, %s74
    %s76 = ssub.s32 %s19, %s30
    %s77 = sor.u32 %s75, %s76
    %p78 = scmp.eq.s32.totalorder %s77, 0
    %s80 = sadd.s32 %s79, 1
    %s81 = scalar_select %p78, %s79, %s80
    %p84 = pneg %p78
    %p85 = scmp.eq.s32.totalorder %s9, 7
    %p86 = por %p84, %p85
    %p87 = scmp.ne.s32.totalorder %s79, %s82
    %p88 = scmp.eq.s32.totalorder %s9, 0
    %p89 = por %p87, %p88
    %p90 = scmp.ne.s32.totalorder %s79, %s82
    %p91 = scmp.eq.s32.totalorder %s14, 7
    %p92 = por %p90, %p91
    %p93 = scmp.ne.s32.totalorder %s82, %s83
    %p94 = scmp.eq.s32.totalorder %s14, 0
    %p95 = por %p93, %p94
    %p96 = scmp.ne.s32.totalorder %s82, %s83
    %p97 = scmp.eq.s32.totalorder %s15, 7
    %p98 = por %p96, %p97
    %p100 = scmp.ne.s32.totalorder %s83, %s99
    %p101 = scmp.eq.s32.totalorder %s15, 0
    %p102 = por %p100, %p101
    %s103 = ssub.s32 %s16, %s42
    %s104 = ssub.s32 %s17, %s38
    %s105 = sor.u32 %s103, %s104
    %s106 = ssub.s32 %s19, %s30
    %s107 = sor.u32 %s105, %s106
    %p108 = scmp.eq.s32.totalorder %s107, 0
    %s110 = sadd.s32 %s109, 1
    %s111 = scalar_select %p108, %s109, %s110
    %p114 = pneg %p108
    %p115 = scmp.eq.s32.totalorder %s9, 7
    %p116 = por %p114, %p115
    %p117 = scmp.ne.s32.totalorder %s109, %s112
    %p118 = scmp.eq.s32.totalorder %s9, 0
    %p119 = por %p117, %p118
    %p120 = scmp.ne.s32.totalorder %s109, %s112
    %p121 = scmp.eq.s32.totalorder %s14, 7
    %p122 = por %p120, %p121
    %p123 = scmp.ne.s32.totalorder %s112, %s113
    %p124 = scmp.eq.s32.totalorder %s14, 0
    %p125 = por %p123, %p124
    %p126 = scmp.ne.s32.totalorder %s112, %s113
    %p127 = scmp.eq.s32.totalorder %s15, 7
    %p128 = por %p126, %p127
    %p130 = scmp.ne.s32.totalorder %s113, %s129
    %p131 = scmp.eq.s32.totalorder %s15, 0
    %p132 = por %p130, %p131
    %s133 = ssub.s32 %s16, %s42
    %s134 = ssub.s32 %s17, %s38
    %s135 = sor.u32 %s133, %s134
    %s136 = ssub.s32 %s18, %s34
    %s137 = sor.u32 %s135, %s136
    %p138 = scmp.eq.s32.totalorder %s137, 0
    %s140 = sadd.s32 %s139, 1
    %s141 = scalar_select %p138, %s139, %s140
    %p144 = pneg %p138
    %p145 = scmp.eq.s32.totalorder %s9, 7
    %p146 = por %p144, %p145
    %p147 = scmp.ne.s32.totalorder %s139, %s142
    %p148 = scmp.eq.s32.totalorder %s9, 0
    %p149 = por %p147, %p148
    %p150 = scmp.ne.s32.totalorder %s139, %s142
    %p151 = scmp.eq.s32.totalorder %s14, 7
    %p152 = por %p150, %p151
    %p153 = scmp.ne.s32.totalorder %s142, %s143
    %p154 = scmp.eq.s32.totalorder %s14, 0
    %p155 = por %p153, %p154
    %p156 = scmp.ne.s32.totalorder %s142, %s143
    %p157 = scmp.eq.s32.totalorder %s15, 7
    %p158 = por %p156, %p157
    %p160 = scmp.ne.s32.totalorder %s143, %s159
    %p161 = scmp.eq.s32.totalorder %s15, 0
    %p162 = por %p160, %p161
    %p163 = scmp.le.s32.totalorder 1, %s9
    %p164 = scmp.lt.s32.totalorder %s9, 9
    %p165 = pnand %p163, %p164
    %p166 = pneg %p165
    // Predicated region
    $region9: #{tpu_custom_call.1} parent=5 // pred_check
      _
    $region10: #{tpu_custom_call.1} parent=5 // pred_check_branch
      %168 = sbr.rel (%p165) target = $region12
    $region11: #{tpu_custom_call.1} parent=5 // pred_region
      %s169 = ssub.s32 %s9, 1
    $region12: #{tpu_custom_call.1} parent=5 // pred_fallthru
      _
    %p170 = scmp.lt.s32.totalorder %s9, 8
    // Predicated region
    $region13: #{tpu_custom_call.1} parent=5 // pred_check
      %p171 = pneg %p170
    $region14: #{tpu_custom_call.1} parent=5 // pred_check_branch
      %173 = sbr.rel (%p171) target = $region16
    $region15: #{tpu_custom_call.1} parent=5 // pred_region
      // Predicated region
      $region17: #{tpu_custom_call.1} parent=15 // pred_check
        %p174 = pneg %p59
      $region18: #{tpu_custom_call.1} parent=15 // pred_check_branch
        %176 = sbr.rel (%p174) target = $region20
      $region19: #{tpu_custom_call.1} parent=15 // pred_region
        %s177 = smul.u32 32, %s18
        %p178 = scmp.lt.s32.totalorder %s16, 1
        %s179 = scalar_select %p178, %s16, 1
        %p180 = scmp.lt.s32.totalorder %s17, 3
        %s181 = scalar_select %p180, %s17, 3
        %p182 = scmp.lt.s32.totalorder %s177, 31
        %s183 = scalar_select %p182, %s177, 31
        %s184 = smul.addr %s181, 32
        %s185 = sadd.s32 %s183, %s184
        %s186 = smul.addr %s179, 128
        %s187 = sadd.s32 %s185, %s186
        %s188 = smul.addr %s187, 8
        %s189 = scalar_lea.vmem %s0, %s188
        %s190 = smul.u32 32, %s18
      $region20: #{tpu_custom_call.1} parent=15 // pred_fallthru
        _
      // Predicated region
      $region21: #{tpu_custom_call.1} parent=15 // pred_check
        %p191 = pneg %p89
      $region22: #{tpu_custom_call.1} parent=15 // pred_check_branch
        %193 = sbr.rel (%p191) target = $region24
      $region23: #{tpu_custom_call.1} parent=15 // pred_region
        %s194 = smul.u32 32, %s19
        %p195 = scmp.lt.s32.totalorder %s16, 1
        %s196 = scalar_select %p195, %s16, 1
        %p197 = scmp.lt.s32.totalorder %s17, 3
        %s198 = scalar_select %p197, %s17, 3
        %p199 = scmp.lt.s32.totalorder %s194, 31
        %s200 = scalar_select %p199, %s194, 31
        %s201 = smul.addr %s198, 32
        %s202 = sadd.s32 %s200, %s201
        %s203 = smul.addr %s196, 128
        %s204 = sadd.s32 %s202, %s203
        %s205 = smul.addr %s204, 8
        %s206 = scalar_lea.vmem %s1, %s205
        %s207 = smul.u32 32, %s19
      $region24: #{tpu_custom_call.1} parent=15 // pred_fallthru
        _
      // Predicated region
      $region25: #{tpu_custom_call.1} parent=15 // pred_check
        %p208 = pneg %p119
      $region26: #{tpu_custom_call.1} parent=15 // pred_check_branch
        %210 = sbr.rel (%p208) target = $region28
      $region27: #{tpu_custom_call.1} parent=15 // pred_region
        %s211 = smul.u32 32, %s19
        %p212 = scmp.lt.s32.totalorder %s16, 1
        %s213 = scalar_select %p212, %s16, 1
        %p214 = scmp.lt.s32.totalorder %s17, 3
        %s215 = scalar_select %p214, %s17, 3
        %p216 = scmp.lt.s32.totalorder %s211, 31
        %s217 = scalar_select %p216, %s211, 31
        %s218 = smul.addr %s215, 32
        %s219 = sadd.s32 %s217, %s218
        %s220 = smul.addr %s213, 128
        %s221 = sadd.s32 %s219, %s220
        %s222 = smul.addr %s221, 8
        %s223 = scalar_lea.vmem %s2, %s222
        %s224 = smul.u32 32, %s19
      $region28: #{tpu_custom_call.1} parent=15 // pred_fallthru
        _
    $region16: #{tpu_custom_call.1} parent=5 // pred_fallthru
      _
    %p225 = scmp.le.s32.totalorder 1, %s9
    %p226 = scmp.lt.s32.totalorder %s9, 9
    %p227 = pnand %p225, %p226
    %p228 = pneg %p227
    // Predicated region
    $region29: #{tpu_custom_call.1} parent=5 // pred_check
      _
    $region30: #{tpu_custom_call.1} parent=5 // pred_check_branch
      %230 = sbr.rel (%p227) target = $region32
    $region31: #{tpu_custom_call.1} parent=5 // pred_region
      %s231 = ssub.s32 %s9, 1
      %s232 = smul.u32 32, %s22
      %p233 = scmp.lt.s32.totalorder %s20, 1
      %s234 = scalar_select %p233, %s20, 1
      %p235 = scmp.lt.s32.totalorder %s21, 3
      %s236 = scalar_select %p235, %s21, 3
      %p237 = scmp.lt.s32.totalorder %s232, 31
      %s238 = scalar_select %p237, %s232, 31
      %s239 = smul.addr %s236, 32
      %s240 = sadd.s32 %s238, %s239
      %s241 = smul.addr %s234, 128
      %s242 = sadd.s32 %s240, %s241
      %s243 = smul.addr %s242, 8
      %s244 = scalar_lea.vmem %s0, %s243
      %p245 = pneg %p65
      %p246 = pneg %p62
      %s247 = smul.u32 32, %s23
      %p248 = scmp.lt.s32.totalorder %s20, 1
      %s249 = scalar_select %p248, %s20, 1
      %p250 = scmp.lt.s32.totalorder %s21, 3
      %s251 = scalar_select %p250, %s21, 3
      %p252 = scmp.lt.s32.totalorder %s247, 31
      %s253 = scalar_select %p252, %s247, 31
      %s254 = smul.addr %s251, 32
      %s255 = sadd.s32 %s253, %s254
      %s256 = smul.addr %s249, 128
      %s257 = sadd.s32 %s255, %s256
      %s258 = smul.addr %s257, 8
      %s259 = scalar_lea.vmem %s1, %s258
      %p260 = pneg %p95
      %p261 = pneg %p92
      %s262 = smul.u32 32, %s23
      %p263 = scmp.lt.s32.totalorder %s20, 1
      %s264 = scalar_select %p263, %s20, 1
      %p265 = scmp.lt.s32.totalorder %s21, 3
      %s266 = scalar_select %p265, %s21, 3
      %p267 = scmp.lt.s32.totalorder %s262, 31
      %s268 = scalar_select %p267, %s262, 31
      %s269 = smul.addr %s266, 32
      %s270 = sadd.s32 %s268, %s269
      %s271 = smul.addr %s264, 128
      %s272 = sadd.s32 %s270, %s271
      %s273 = smul.addr %s272, 8
      %s274 = scalar_lea.vmem %s2, %s273
      %p275 = pneg %p125
      %p276 = pneg %p122
      %p277 = pneg %p155
      %p278 = pneg %p152
      %s279 = smul.u32 32, %s22
      %p280 = scmp.lt.s32.totalorder %s20, 1
      %s281 = scalar_select %p280, %s20, 1
      %p282 = scmp.lt.s32.totalorder %s21, 3
      %s283 = scalar_select %p282, %s21, 3
      %p284 = scmp.lt.s32.totalorder %s279, 31
      %s285 = scalar_select %p284, %s279, 31
      %s286 = smul.addr %s283, 32
      %s287 = sadd.s32 %s285, %s286
      %s288 = smul.addr %s281, 128
      %s289 = sadd.s32 %s287, %s288
      %s290 = smul.addr %s289, 8
      %s291 = scalar_lea.vmem %s3, %s290
      %s292 = smul.u32 32, %s22
      %p293 = scmp.lt.s32.totalorder %s20, 1
      %s294 = scalar_select %p293, %s20, 1
      %p295 = scmp.lt.s32.totalorder %s21, 3
      %s296 = scalar_select %p295, %s21, 3
      %p297 = scmp.lt.s32.totalorder %s292, 31
      %s298 = scalar_select %p297, %s292, 31
      %s299 = smul.addr %s296, 32
      %s300 = sadd.s32 %s298, %s299
      %s301 = smul.addr %s294, 128
      %s302 = sadd.s32 %s300, %s301
      %s303 = smul.addr %s302, 8
      %s304 = scalar_lea.vmem %s0, %s303
      %s305 = smul.u32 32, %s22
      %s306 = smul.u32 32, %s23
      %p307 = scmp.lt.s32.totalorder %s20, 1
      %s308 = scalar_select %p307, %s20, 1
      %p309 = scmp.lt.s32.totalorder %s21, 3
      %s310 = scalar_select %p309, %s21, 3
      %p311 = scmp.lt.s32.totalorder %s306, 31
      %s312 = scalar_select %p311, %s306, 31
      %s313 = smul.addr %s310, 32
      %s314 = sadd.s32 %s312, %s313
      %s315 = smul.addr %s308, 128
      %s316 = sadd.s32 %s314, %s315
      %s317 = smul.addr %s316, 8
      %s318 = scalar_lea.vmem %s1, %s317
      %s319 = smul.u32 32, %s23
      %s320 = smul.u32 32, %s23
      %p321 = scmp.lt.s32.totalorder %s20, 1
      %s322 = scalar_select %p321, %s20, 1
      %p323 = scmp.lt.s32.totalorder %s21, 3
      %s324 = scalar_select %p323, %s21, 3
      %p325 = scmp.lt.s32.totalorder %s320, 31
      %s326 = scalar_select %p325, %s320, 31
      %s327 = smul.addr %s324, 32
      %s328 = sadd.s32 %s326, %s327
      %s329 = smul.addr %s322, 128
      %s330 = sadd.s32 %s328, %s329
      %s331 = smul.addr %s330, 8
      %s332 = scalar_lea.vmem %s2, %s331
      %s333 = smul.u32 32, %s23
      %s334 = smul.u32 32, %s22
      %p335 = scmp.lt.s32.totalorder %s20, 1
      %s336 = scalar_select %p335, %s20, 1
      %p337 = scmp.lt.s32.totalorder %s21, 3
      %s338 = scalar_select %p337, %s21, 3
      %p339 = scmp.lt.s32.totalorder %s334, 31
      %s340 = scalar_select %p339, %s334, 31
      %s341 = smul.addr %s338, 32
      %s342 = sadd.s32 %s340, %s341
      %s343 = smul.addr %s336, 128
      %s344 = sadd.s32 %s342, %s343
      %s345 = smul.addr %s344, 8
      %s346 = scalar_lea.vmem %s3, %s345
      %s347 = smul.u32 32, %s22
      %p348 = scmp.eq.s32.totalorder %s23, 0
      // Predicated region
      $region33: #{tpu_custom_call.1} parent=31 // pred_check
        %p349 = pneg %p348
      $region34: #{tpu_custom_call.1} parent=31 // pred_check_branch
        %351 = sbr.rel (%p349) target = $region36
      $region35: #{tpu_custom_call.1} parent=31 // pred_region
        %vm352 = vcmask 7168
        %353 = vst.msk [vmem:[#allocation2] sm:$0xff] %vm352, -inf
        %354 = vst.msk [vmem:[#allocation2 + $0x8] sm:$0xff] %vm352, -inf
        %355 = vst.msk [vmem:[#allocation2 + $0x10] sm:$0xff] %vm352, -inf
        %356 = vst.msk [vmem:[#allocation2 + $0x18] sm:$0xff] %vm352, -inf
        %357 = vst.msk [vmem:[#allocation2 + $0x20] sm:$0xff] %vm352, -inf
        %358 = vst.msk [vmem:[#allocation2 + $0x28] sm:$0xff] %vm352, -inf
        %359 = vst.msk [vmem:[#allocation2 + $0x30] sm:$0xff] %vm352, -inf
        %360 = vst.msk [vmem:[#allocation2 + $0x38] sm:$0xff] %vm352, -inf
        %361 = vst.msk [vmem:[#allocation2 + $0x40] sm:$0xff] %vm352, -inf
        %362 = vst.msk [vmem:[#allocation2 + $0x48] sm:$0xff] %vm352, -inf
        %363 = vst.msk [vmem:[#allocation2 + $0x50] sm:$0xff] %vm352, -inf
        %364 = vst.msk [vmem:[#allocation2 + $0x58] sm:$0xff] %vm352, -inf
        %365 = vst.msk [vmem:[#allocation2 + $0x60] sm:$0xff] %vm352, -inf
        %366 = vst.msk [vmem:[#allocation2 + $0x68] sm:$0xff] %vm352, -inf
        %367 = vst.msk [vmem:[#allocation2 + $0x70] sm:$0xff] %vm352, -inf
        %368 = vst.msk [vmem:[#allocation2 + $0x78] sm:$0xff] %vm352, -inf
        %369 = vst.msk [vmem:[#allocation2 + $0x80] sm:$0xff] %vm352, -inf
        %370 = vst.msk [vmem:[#allocation2 + $0x88] sm:$0xff] %vm352, -inf
        %371 = vst.msk [vmem:[#allocation2 + $0x90] sm:$0xff] %vm352, -inf
        %372 = vst.msk [vmem:[#allocation2 + $0x98] sm:$0xff] %vm352, -inf
        %373 = vst.msk [vmem:[#allocation2 + $0xa0] sm:$0xff] %vm352, -inf
        %374 = vst.msk [vmem:[#allocation2 + $0xa8] sm:$0xff] %vm352, -inf
        %375 = vst.msk [vmem:[#allocation2 + $0xb0] sm:$0xff] %vm352, -inf
        %376 = vst.msk [vmem:[#allocation2 + $0xb8] sm:$0xff] %vm352, -inf
        %377 = vst.msk [vmem:[#allocation2 + $0xc0] sm:$0xff] %vm352, -inf
        %378 = vst.msk [vmem:[#allocation2 + $0xc8] sm:$0xff] %vm352, -inf
        %379 = vst.msk [vmem:[#allocation2 + $0xd0] sm:$0xff] %vm352, -inf
        %380 = vst.msk [vmem:[#allocation2 + $0xd8] sm:$0xff] %vm352, -inf
        %381 = vst.msk [vmem:[#allocation2 + $0xe0] sm:$0xff] %vm352, -inf
        %382 = vst.msk [vmem:[#allocation2 + $0xe8] sm:$0xff] %vm352, -inf
        %383 = vst.msk [vmem:[#allocation2 + $0xf0] sm:$0xff] %vm352, -inf
        %384 = vst.msk [vmem:[#allocation2 + $0xf8] sm:$0xff] %vm352, -inf
        %385 = vst.msk [vmem:[#allocation3] sm:$0xff] %vm352, 0.0
        %386 = vst.msk [vmem:[#allocation3 + $0x8] sm:$0xff] %vm352, 0.0
        %387 = vst.msk [vmem:[#allocation3 + $0x10] sm:$0xff] %vm352, 0.0
        %388 = vst.msk [vmem:[#allocation3 + $0x18] sm:$0xff] %vm352, 0.0
        %389 = vst.msk [vmem:[#allocation3 + $0x20] sm:$0xff] %vm352, 0.0
        %390 = vst.msk [vmem:[#allocation3 + $0x28] sm:$0xff] %vm352, 0.0
        %391 = vst.msk [vmem:[#allocation3 + $0x30] sm:$0xff] %vm352, 0.0
        %392 = vst.msk [vmem:[#allocation3 + $0x38] sm:$0xff] %vm352, 0.0
        %393 = vst.msk [vmem:[#allocation3 + $0x40] sm:$0xff] %vm352, 0.0
        %394 = vst.msk [vmem:[#allocation3 + $0x48] sm:$0xff] %vm352, 0.0
        %395 = vst.msk [vmem:[#allocation3 + $0x50] sm:$0xff] %vm352, 0.0
        %396 = vst.msk [vmem:[#allocation3 + $0x58] sm:$0xff] %vm352, 0.0
        %397 = vst.msk [vmem:[#allocation3 + $0x60] sm:$0xff] %vm352, 0.0
        %398 = vst.msk [vmem:[#allocation3 + $0x68] sm:$0xff] %vm352, 0.0
        %399 = vst.msk [vmem:[#allocation3 + $0x70] sm:$0xff] %vm352, 0.0
        %400 = vst.msk [vmem:[#allocation3 + $0x78] sm:$0xff] %vm352, 0.0
        %401 = vst.msk [vmem:[#allocation3 + $0x80] sm:$0xff] %vm352, 0.0
        %402 = vst.msk [vmem:[#allocation3 + $0x88] sm:$0xff] %vm352, 0.0
        %403 = vst.msk [vmem:[#allocation3 + $0x90] sm:$0xff] %vm352, 0.0
        %404 = vst.msk [vmem:[#allocation3 + $0x98] sm:$0xff] %vm352, 0.0
        %405 = vst.msk [vmem:[#allocation3 + $0xa0] sm:$0xff] %vm352, 0.0
        %406 = vst.msk [vmem:[#allocation3 + $0xa8] sm:$0xff] %vm352, 0.0
        %407 = vst.msk [vmem:[#allocation3 + $0xb0] sm:$0xff] %vm352, 0.0
        %408 = vst.msk [vmem:[#allocation3 + $0xb8] sm:$0xff] %vm352, 0.0
        %409 = vst.msk [vmem:[#allocation3 + $0xc0] sm:$0xff] %vm352, 0.0
        %410 = vst.msk [vmem:[#allocation3 + $0xc8] sm:$0xff] %vm352, 0.0
        %411 = vst.msk [vmem:[#allocation3 + $0xd0] sm:$0xff] %vm352, 0.0
        %412 = vst.msk [vmem:[#allocation3 + $0xd8] sm:$0xff] %vm352, 0.0
        %413 = vst.msk [vmem:[#allocation3 + $0xe0] sm:$0xff] %vm352, 0.0
        %414 = vst.msk [vmem:[#allocation3 + $0xe8] sm:$0xff] %vm352, 0.0
        %415 = vst.msk [vmem:[#allocation3 + $0xf0] sm:$0xff] %vm352, 0.0
        %416 = vst.msk [vmem:[#allocation3 + $0xf8] sm:$0xff] %vm352, 0.0
        %vm417 = vcmask 261120
        %418 = vst.msk [vmem:[#allocation4] sm:$0xff] %vm417, 0.0
        %419 = vst.msk [vmem:[#allocation4 + $0x8] sm:$0xff] %vm417, 0.0
        %420 = vst.msk [vmem:[#allocation4 + $0x10] sm:$0xff] %vm417, 0.0
        %421 = vst.msk [vmem:[#allocation4 + $0x18] sm:$0xff] %vm417, 0.0
        %422 = vst.msk [vmem:[#allocation4 + $0x20] sm:$0xff] %vm417, 0.0
        %423 = vst.msk [vmem:[#allocation4 + $0x28] sm:$0xff] %vm417, 0.0
        %424 = vst.msk [vmem:[#allocation4 + $0x30] sm:$0xff] %vm417, 0.0
        %425 = vst.msk [vmem:[#allocation4 + $0x38] sm:$0xff] %vm417, 0.0
        %426 = vst.msk [vmem:[#allocation4 + $0x40] sm:$0xff] %vm417, 0.0
        %427 = vst.msk [vmem:[#allocation4 + $0x48] sm:$0xff] %vm417, 0.0
        %428 = vst.msk [vmem:[#allocation4 + $0x50] sm:$0xff] %vm417, 0.0
        %429 = vst.msk [vmem:[#allocation4 + $0x58] sm:$0xff] %vm417, 0.0
        %430 = vst.msk [vmem:[#allocation4 + $0x60] sm:$0xff] %vm417, 0.0
        %431 = vst.msk [vmem:[#allocation4 + $0x68] sm:$0xff] %vm417, 0.0
        %432 = vst.msk [vmem:[#allocation4 + $0x70] sm:$0xff] %vm417, 0.0
        %433 = vst.msk [vmem:[#allocation4 + $0x78] sm:$0xff] %vm417, 0.0
        %434 = vst.msk [vmem:[#allocation4 + $0x80] sm:$0xff] %vm417, 0.0
        %435 = vst.msk [vmem:[#allocation4 + $0x88] sm:$0xff] %vm417, 0.0
        %436 = vst.msk [vmem:[#allocation4 + $0x90] sm:$0xff] %vm417, 0.0
        %437 = vst.msk [vmem:[#allocation4 + $0x98] sm:$0xff] %vm417, 0.0
        %438 = vst.msk [vmem:[#allocation4 + $0xa0] sm:$0xff] %vm417, 0.0
        %439 = vst.msk [vmem:[#allocation4 + $0xa8] sm:$0xff] %vm417, 0.0
        %440 = vst.msk [vmem:[#allocation4 + $0xb0] sm:$0xff] %vm417, 0.0
        %441 = vst.msk [vmem:[#allocation4 + $0xb8] sm:$0xff] %vm417, 0.0
        %442 = vst.msk [vmem:[#allocation4 + $0xc0] sm:$0xff] %vm417, 0.0
        %443 = vst.msk [vmem:[#allocation4 + $0xc8] sm:$0xff] %vm417, 0.0
        %444 = vst.msk [vmem:[#allocation4 + $0xd0] sm:$0xff] %vm417, 0.0
        %445 = vst.msk [vmem:[#allocation4 + $0xd8] sm:$0xff] %vm417, 0.0
        %446 = vst.msk [vmem:[#allocation4 + $0xe0] sm:$0xff] %vm417, 0.0
        %447 = vst.msk [vmem:[#allocation4 + $0xe8] sm:$0xff] %vm417, 0.0
        %448 = vst.msk [vmem:[#allocation4 + $0xf0] sm:$0xff] %vm417, 0.0
        %449 = vst.msk [vmem:[#allocation4 + $0xf8] sm:$0xff] %vm417, 0.0
      $region36: #{tpu_custom_call.1} parent=31 // pred_fallthru
        _
      %v450 = vld [vmem:[%s304] sm:$0xff]
      %v451 = vld [vmem:[%s304 + $0x8] sm:$0xff]
      %v452 = vld [vmem:[%s304 + $0x10] sm:$0xff]
      %v453 = vld [vmem:[%s304 + $0x18] sm:$0xff]
      %v454 = vld [vmem:[%s304 + $0x20] sm:$0xff]
      %v455 = vld [vmem:[%s304 + $0x28] sm:$0xff]
      %v456 = vld [vmem:[%s304 + $0x30] sm:$0xff]
      %v457 = vld [vmem:[%s304 + $0x38] sm:$0xff]
      %v458 = vld [vmem:[%s304 + $0x40] sm:$0xff]
      %v459 = vld [vmem:[%s304 + $0x48] sm:$0xff]
      %v460 = vld [vmem:[%s304 + $0x50] sm:$0xff]
      %v461 = vld [vmem:[%s304 + $0x58] sm:$0xff]
      %v462 = vld [vmem:[%s304 + $0x60] sm:$0xff]
      %v463 = vld [vmem:[%s304 + $0x68] sm:$0xff]
      %v464 = vld [vmem:[%s304 + $0x70] sm:$0xff]
      %v465 = vld [vmem:[%s304 + $0x78] sm:$0xff]
      %v466 = vld [vmem:[%s304 + $0x80] sm:$0xff]
      %v467 = vld [vmem:[%s304 + $0x88] sm:$0xff]
      %v468 = vld [vmem:[%s304 + $0x90] sm:$0xff]
      %v469 = vld [vmem:[%s304 + $0x98] sm:$0xff]
      %v470 = vld [vmem:[%s304 + $0xa0] sm:$0xff]
      %v471 = vld [vmem:[%s304 + $0xa8] sm:$0xff]
      %v472 = vld [vmem:[%s304 + $0xb0] sm:$0xff]
      %v473 = vld [vmem:[%s304 + $0xb8] sm:$0xff]
      %v474 = vld [vmem:[%s304 + $0xc0] sm:$0xff]
      %v475 = vld [vmem:[%s304 + $0xc8] sm:$0xff]
      %v476 = vld [vmem:[%s304 + $0xd0] sm:$0xff]
      %v477 = vld [vmem:[%s304 + $0xd8] sm:$0xff]
      %v478 = vld [vmem:[%s304 + $0xe0] sm:$0xff]
      %v479 = vld [vmem:[%s304 + $0xe8] sm:$0xff]
      %v480 = vld [vmem:[%s304 + $0xf0] sm:$0xff]
      %v481 = vld [vmem:[%s304 + $0xf8] sm:$0xff]
      %v482 = vmul.f32 %v450, 0.17677669
      %v483 = vmul.f32 %v451, 0.17677669
      %v484 = vmul.f32 %v452, 0.17677669
      %v485 = vmul.f32 %v453, 0.17677669
      %v486 = vmul.f32 %v454, 0.17677669
      %v487 = vmul.f32 %v455, 0.17677669
      %v488 = vmul.f32 %v456, 0.17677669
      %v489 = vmul.f32 %v457, 0.17677669
      %v490 = vmul.f32 %v458, 0.17677669
      %v491 = vmul.f32 %v459, 0.17677669
      %v492 = vmul.f32 %v460, 0.17677669
      %v493 = vmul.f32 %v461, 0.17677669
      %v494 = vmul.f32 %v462, 0.17677669
      %v495 = vmul.f32 %v463, 0.17677669
      %v496 = vmul.f32 %v464, 0.17677669
      %v497 = vmul.f32 %v465, 0.17677669
      %v498 = vmul.f32 %v466, 0.17677669
      %v499 = vmul.f32 %v467, 0.17677669
      %v500 = vmul.f32 %v468, 0.17677669
      %v501 = vmul.f32 %v469, 0.17677669
      %v502 = vmul.f32 %v470, 0.17677669
      %v503 = vmul.f32 %v471, 0.17677669
      %v504 = vmul.f32 %v472, 0.17677669
      %v505 = vmul.f32 %v473, 0.17677669
      %v506 = vmul.f32 %v474, 0.17677669
      %v507 = vmul.f32 %v475, 0.17677669
      %v508 = vmul.f32 %v476, 0.17677669
      %v509 = vmul.f32 %v477, 0.17677669
      %v510 = vmul.f32 %v478, 0.17677669
      %v511 = vmul.f32 %v479, 0.17677669
      %v512 = vmul.f32 %v480, 0.17677669
      %v513 = vmul.f32 %v481, 0.17677669
      %v514 = vld [vmem:[%s318] sm:$0xff]
      %v515 = vld [vmem:[%s318 + $0x8] sm:$0xff]
      %v516 = vld [vmem:[%s318 + $0x10] sm:$0xff]
      %v517 = vld [vmem:[%s318 + $0x18] sm:$0xff]
      %v518 = vld [vmem:[%s318 + $0x20] sm:$0xff]
      %v519 = vld [vmem:[%s318 + $0x28] sm:$0xff]
      %v520 = vld [vmem:[%s318 + $0x30] sm:$0xff]
      %v521 = vld [vmem:[%s318 + $0x38] sm:$0xff]
      %v522 = vld [vmem:[%s318 + $0x40] sm:$0xff]
      %v523 = vld [vmem:[%s318 + $0x48] sm:$0xff]
      %v524 = vld [vmem:[%s318 + $0x50] sm:$0xff]
      %v525 = vld [vmem:[%s318 + $0x58] sm:$0xff]
      %v526 = vld [vmem:[%s318 + $0x60] sm:$0xff]
      %v527 = vld [vmem:[%s318 + $0x68] sm:$0xff]
      %v528 = vld [vmem:[%s318 + $0x70] sm:$0xff]
      %v529 = vld [vmem:[%s318 + $0x78] sm:$0xff]
      %v530 = vld [vmem:[%s318 + $0x80] sm:$0xff]
      %v531 = vld [vmem:[%s318 + $0x88] sm:$0xff]
      %v532 = vld [vmem:[%s318 + $0x90] sm:$0xff]
      %v533 = vld [vmem:[%s318 + $0x98] sm:$0xff]
      %v534 = vld [vmem:[%s318 + $0xa0] sm:$0xff]
      %v535 = vld [vmem:[%s318 + $0xa8] sm:$0xff]
      %v536 = vld [vmem:[%s318 + $0xb0] sm:$0xff]
      %v537 = vld [vmem:[%s318 + $0xb8] sm:$0xff]
      %v538 = vld [vmem:[%s318 + $0xc0] sm:$0xff]
      %v539 = vld [vmem:[%s318 + $0xc8] sm:$0xff]
      %v540 = vld [vmem:[%s318 + $0xd0] sm:$0xff]
      %v541 = vld [vmem:[%s318 + $0xd8] sm:$0xff]
      %v542 = vld [vmem:[%s318 + $0xe0] sm:$0xff]
      %v543 = vld [vmem:[%s318 + $0xe8] sm:$0xff]
      %v544 = vld [vmem:[%s318 + $0xf0] sm:$0xff]
      %v545 = vld [vmem:[%s318 + $0xf8] sm:$0xff]
      %vm546 = vcmask 261120
      %v548 = vsel %vm546, %v482, 0
      %v551 = vsel %vm546, %v483, 0
      %v554 = vsel %vm546, %v484, 0
      %v557 = vsel %vm546, %v485, 0
      %v560 = vsel %vm546, %v486, 0
      %v563 = vsel %vm546, %v487, 0
      %v566 = vsel %vm546, %v488, 0
      %v569 = vsel %vm546, %v489, 0
      %v572 = vsel %vm546, %v490, 0
      %v575 = vsel %vm546, %v491, 0
      %v578 = vsel %vm546, %v492, 0
      %v581 = vsel %vm546, %v493, 0
      %v584 = vsel %vm546, %v494, 0
      %v587 = vsel %vm546, %v495, 0
      %v590 = vsel %vm546, %v496, 0
      %v593 = vsel %vm546, %v497, 0
      %v596 = vsel %vm546, %v498, 0
      %v599 = vsel %vm546, %v499, 0
      %v602 = vsel %vm546, %v500, 0
      %v605 = vsel %vm546, %v501, 0
      %v608 = vsel %vm546, %v502, 0
      %v611 = vsel %vm546, %v503, 0
      %v614 = vsel %vm546, %v504, 0
      %v617 = vsel %vm546, %v505, 0
      %v620 = vsel %vm546, %v506, 0
      %v623 = vsel %vm546, %v507, 0
      %v626 = vsel %vm546, %v508, 0
      %v629 = vsel %vm546, %v509, 0
      %v632 = vsel %vm546, %v510, 0
      %v635 = vsel %vm546, %v511, 0
      %v638 = vsel %vm546, %v512, 0
      %v641 = vsel %vm546, %v513, 0
      %v644 = vsel %vm546, %v514, 0
      %v647 = vsel %vm546, %v515, 0
      %v650 = vsel %vm546, %v516, 0
      %v653 = vsel %vm546, %v517, 0
      %v656 = vsel %vm546, %v518, 0
      %v659 = vsel %vm546, %v519, 0
      %v662 = vsel %vm546, %v520, 0
      %v665 = vsel %vm546, %v521, 0
      %v668 = vsel %vm546, %v522, 0
      %v671 = vsel %vm546, %v523, 0
      %v674 = vsel %vm546, %v524, 0
      %v677 = vsel %vm546, %v525, 0
      %v680 = vsel %vm546, %v526, 0
      %v683 = vsel %vm546, %v527, 0
      %v686 = vsel %vm546, %v528, 0
      %v689 = vsel %vm546, %v529, 0
      %v692 = vsel %vm546, %v530, 0
      %v695 = vsel %vm546, %v531, 0
      %v698 = vsel %vm546, %v532, 0
      %v701 = vsel %vm546, %v533, 0
      %v704 = vsel %vm546, %v534, 0
      %v707 = vsel %vm546, %v535, 0
      %v710 = vsel %vm546, %v536, 0
      %v713 = vsel %vm546, %v537, 0
      %v716 = vsel %vm546, %v538, 0
      %v719 = vsel %vm546, %v539, 0
      %v722 = vsel %vm546, %v540, 0
      %v725 = vsel %vm546, %v541, 0
      %v728 = vsel %vm546, %v542, 0
      %v731 = vsel %vm546, %v543, 0
      %v734 = vsel %vm546, %v544, 0
      %v737 = vsel %vm546, %v545, 0
      %739 = vmatprep.subr.mxu0 0.0
      %740 = vmatpush1.xpose.msra.mxu0 %v689
      %741 = vmatprep.subr.mxu0 0.0
      %742 = vmatpush1.xpose.msra.mxu0 %v686
      %743 = vmatprep.subr.mxu0 0.0
      %744 = vmatpush1.xpose.msra.mxu0 %v683
      %745 = vmatprep.subr.mxu0 0.0
      %746 = vmatpush1.xpose.msra.mxu0 %v680
      %747 = vmatprep.subr.mxu0 0.0
      %748 = vmatpush1.xpose.msra.mxu0 %v677
      %749 = vmatprep.subr.mxu0 0.0
      %750 = vmatpush1.xpose.msra.mxu0 %v674
      %751 = vmatprep.subr.mxu0 0.0
      %752 = vmatpush1.xpose.msra.mxu0 %v671
      %753 = vmatprep.subr.mxu0 0.0
      %754 = vmatpush1.xpose.msra.mxu0 %v668
      %755 = vmatprep.subr.mxu0 0.0
      %756 = vmatpush1.xpose.msra.mxu0 %v665
      %757 = vmatprep.subr.mxu0 0.0
      %758 = vmatpush1.xpose.msra.mxu0 %v662
      %759 = vmatprep.subr.mxu0 0.0
      %760 = vmatpush1.xpose.msra.mxu0 %v659
      %761 = vmatprep.subr.mxu0 0.0
      %762 = vmatpush1.xpose.msra.mxu0 %v656
      %763 = vmatprep.subr.mxu0 0.0
      %764 = vmatpush1.xpose.msra.mxu0 %v653
      %765 = vmatprep.subr.mxu0 0.0
      %766 = vmatpush1.xpose.msra.mxu0 %v650
      %767 = vmatprep.subr.mxu0 0.0
      %768 = vmatpush1.xpose.msra.mxu0 %v647
      %769 = vmatprep.subr.mxu0 0.0
      %770 = vmatpush1.xpose.msra.mxu0 %v644
      %771 = vmatprep.subr.mxu0 0.0
      %772 = vmatpush2.xpose.msra.mxu0 %v737
      %773 = vmatprep.subr.mxu0 0.0
      %774 = vmatpush2.xpose.msra.mxu0 %v734
      %775 = vmatprep.subr.mxu0 0.0
      %776 = vmatpush2.xpose.msra.mxu0 %v731
      %777 = vmatprep.subr.mxu0 0.0
      %778 = vmatpush2.xpose.msra.mxu0 %v728
      %779 = vmatprep.subr.mxu0 0.0
      %780 = vmatpush2.xpose.msra.mxu0 %v725
      %781 = vmatprep.subr.mxu0 0.0
      %782 = vmatpush2.xpose.msra.mxu0 %v722
      %783 = vmatprep.subr.mxu0 0.0
      %784 = vmatpush2.xpose.msra.mxu0 %v719
      %785 = vmatprep.subr.mxu0 0.0
      %786 = vmatpush2.xpose.msra.mxu0 %v716
      %787 = vmatprep.subr.mxu0 0.0
      %788 = vmatpush2.xpose.msra.mxu0 %v713
      %789 = vmatprep.subr.mxu0 0.0
      %790 = vmatpush2.xpose.msra.mxu0 %v710
      %791 = vmatprep.subr.mxu0 0.0
      %792 = vmatpush2.xpose.msra.mxu0 %v707
      %793 = vmatprep.subr.mxu0 0.0
      %794 = vmatpush2.xpose.msra.mxu0 %v704
      %795 = vmatprep.subr.mxu0 0.0
      %796 = vmatpush2.xpose.msra.mxu0 %v701
      %797 = vmatprep.subr.mxu0 0.0
      %798 = vmatpush2.xpose.msra.mxu0 %v698
      %799 = vmatprep.subr.mxu0 0.0
      %800 = vmatpush2.xpose.msra.mxu0 %v695
      %801 = vmatprep.subr.mxu0 0.0
      %802 = vmatpush2.xpose.msra.mxu0 %v692
      %803 = vmatprep.mubr.f32.mxu0 0.0
      %804 = vmatmul.mubr.f32.gmra.mxu0 %v548
      %v805 = vpop.f32.mrf.mxu0
      %v806 = vadd.f32 0.0, %v805
      %v807 = vpop.f32.mrf.mxu0
      %v808 = vadd.f32 0.0, %v807
      %809 = vmatprep.mubr.f32.mxu0 0.0
      %810 = vmatmul.mubr.f32.gmra.mxu0 %v551
      %v811 = vpop.f32.mrf.mxu0
      %v812 = vadd.f32 0.0, %v811
      %v813 = vpop.f32.mrf.mxu0
      %v814 = vadd.f32 0.0, %v813
      %815 = vmatprep.mubr.f32.mxu0 0.0
      %816 = vmatmul.mubr.f32.gmra.mxu0 %v554
      %v817 = vpop.f32.mrf.mxu0
      %v818 = vadd.f32 0.0, %v817
      %v819 = vpop.f32.mrf.mxu0
      %v820 = vadd.f32 0.0, %v819
      %821 = vmatprep.mubr.f32.mxu0 0.0
      %822 = vmatmul.mubr.f32.gmra.mxu0 %v557
      %v823 = vpop.f32.mrf.mxu0
      %v824 = vadd.f32 0.0, %v823
      %v825 = vpop.f32.mrf.mxu0
      %v826 = vadd.f32 0.0, %v825
      %827 = vmatprep.mubr.f32.mxu0 0.0
      %828 = vmatmul.mubr.f32.gmra.mxu0 %v560
      %v829 = vpop.f32.mrf.mxu0
      %v830 = vadd.f32 0.0, %v829
      %v831 = vpop.f32.mrf.mxu0
      %v832 = vadd.f32 0.0, %v831
      %833 = vmatprep.mubr.f32.mxu0 0.0
      %834 = vmatmul.mubr.f32.gmra.mxu0 %v563
      %v835 = vpop.f32.mrf.mxu0
      %v836 = vadd.f32 0.0, %v835
      %v837 = vpop.f32.mrf.mxu0
      %v838 = vadd.f32 0.0, %v837
      %839 = vmatprep.mubr.f32.mxu0 0.0
      %840 = vmatmul.mubr.f32.gmra.mxu0 %v566
      %v841 = vpop.f32.mrf.mxu0
      %v842 = vadd.f32 0.0, %v841
      %v843 = vpop.f32.mrf.mxu0
      %v844 = vadd.f32 0.0, %v843
      %845 = vmatprep.mubr.f32.mxu0 0.0
      %846 = vmatmul.mubr.f32.gmra.mxu0 %v569
      %v847 = vpop.f32.mrf.mxu0
      %v848 = vadd.f32 0.0, %v847
      %v849 = vpop.f32.mrf.mxu0
      %v850 = vadd.f32 0.0, %v849
      %851 = vmatprep.mubr.f32.mxu0 0.0
      %852 = vmatmul.mubr.f32.gmra.mxu0 %v572
      %v853 = vpop.f32.mrf.mxu0
      %v854 = vadd.f32 0.0, %v853
      %v855 = vpop.f32.mrf.mxu0
      %v856 = vadd.f32 0.0, %v855
      %857 = vmatprep.mubr.f32.mxu0 0.0
      %858 = vmatmul.mubr.f32.gmra.mxu0 %v575
      %v859 = vpop.f32.mrf.mxu0
      %v860 = vadd.f32 0.0, %v859
      %v861 = vpop.f32.mrf.mxu0
      %v862 = vadd.f32 0.0, %v861
      %863 = vmatprep.mubr.f32.mxu0 0.0
      %864 = vmatmul.mubr.f32.gmra.mxu0 %v578
      %v865 = vpop.f32.mrf.mxu0
      %v866 = vadd.f32 0.0, %v865
      %v867 = vpop.f32.mrf.mxu0
      %v868 = vadd.f32 0.0, %v867
      %869 = vmatprep.mubr.f32.mxu0 0.0
      %870 = vmatmul.mubr.f32.gmra.mxu0 %v581
      %v871 = vpop.f32.mrf.mxu0
      %v872 = vadd.f32 0.0, %v871
      %v873 = vpop.f32.mrf.mxu0
      %v874 = vadd.f32 0.0, %v873
      %875 = vmatprep.mubr.f32.mxu0 0.0
      %876 = vmatmul.mubr.f32.gmra.mxu0 %v584
      %v877 = vpop.f32.mrf.mxu0
      %v878 = vadd.f32 0.0, %v877
      %v879 = vpop.f32.mrf.mxu0
      %v880 = vadd.f32 0.0, %v879
      %881 = vmatprep.mubr.f32.mxu0 0.0
      %882 = vmatmul.mubr.f32.gmra.mxu0 %v587
      %v883 = vpop.f32.mrf.mxu0
      %v884 = vadd.f32 0.0, %v883
      %v885 = vpop.f32.mrf.mxu0
      %v886 = vadd.f32 0.0, %v885
      %887 = vmatprep.mubr.f32.mxu0 0.0
      %888 = vmatmul.mubr.f32.gmra.mxu0 %v590
      %v889 = vpop.f32.mrf.mxu0
      %v890 = vadd.f32 0.0, %v889
      %v891 = vpop.f32.mrf.mxu0
      %v892 = vadd.f32 0.0, %v891
      %893 = vmatprep.mubr.f32.mxu0 0.0
      %894 = vmatmul.mubr.f32.gmra.mxu0 %v593
      %v895 = vpop.f32.mrf.mxu0
      %v896 = vadd.f32 0.0, %v895
      %v897 = vpop.f32.mrf.mxu0
      %v898 = vadd.f32 0.0, %v897
      %899 = vmatprep.mubr.f32.mxu0 0.0
      %900 = vmatmul.mubr.f32.gmra.mxu0 %v596
      %v901 = vpop.f32.mrf.mxu0
      %v902 = vadd.f32 0.0, %v901
      %v903 = vpop.f32.mrf.mxu0
      %v904 = vadd.f32 0.0, %v903
      %905 = vmatprep.mubr.f32.mxu0 0.0
      %906 = vmatmul.mubr.f32.gmra.mxu0 %v599
      %v907 = vpop.f32.mrf.mxu0
      %v908 = vadd.f32 0.0, %v907
      %v909 = vpop.f32.mrf.mxu0
      %v910 = vadd.f32 0.0, %v909
      %911 = vmatprep.mubr.f32.mxu0 0.0
      %912 = vmatmul.mubr.f32.gmra.mxu0 %v602
      %v913 = vpop.f32.mrf.mxu0
      %v914 = vadd.f32 0.0, %v913
      %v915 = vpop.f32.mrf.mxu0
      %v916 = vadd.f32 0.0, %v915
      %917 = vmatprep.mubr.f32.mxu0 0.0
      %918 = vmatmul.mubr.f32.gmra.mxu0 %v605
      %v919 = vpop.f32.mrf.mxu0
      %v920 = vadd.f32 0.0, %v919
      %v921 = vpop.f32.mrf.mxu0
      %v922 = vadd.f32 0.0, %v921
      %923 = vmatprep.mubr.f32.mxu0 0.0
      %924 = vmatmul.mubr.f32.gmra.mxu0 %v608
      %v925 = vpop.f32.mrf.mxu0
      %v926 = vadd.f32 0.0, %v925
      %v927 = vpop.f32.mrf.mxu0
      %v928 = vadd.f32 0.0, %v927
      %929 = vmatprep.mubr.f32.mxu0 0.0
      %930 = vmatmul.mubr.f32.gmra.mxu0 %v611
      %v931 = vpop.f32.mrf.mxu0
      %v932 = vadd.f32 0.0, %v931
      %v933 = vpop.f32.mrf.mxu0
      %v934 = vadd.f32 0.0, %v933
      %935 = vmatprep.mubr.f32.mxu0 0.0
      %936 = vmatmul.mubr.f32.gmra.mxu0 %v614
      %v937 = vpop.f32.mrf.mxu0
      %v938 = vadd.f32 0.0, %v937
      %v939 = vpop.f32.mrf.mxu0
      %v940 = vadd.f32 0.0, %v939
      %941 = vmatprep.mubr.f32.mxu0 0.0
      %942 = vmatmul.mubr.f32.gmra.mxu0 %v617
      %v943 = vpop.f32.mrf.mxu0
      %v944 = vadd.f32 0.0, %v943
      %v945 = vpop.f32.mrf.mxu0
      %v946 = vadd.f32 0.0, %v945
      %947 = vmatprep.mubr.f32.mxu0 0.0
      %948 = vmatmul.mubr.f32.gmra.mxu0 %v620
      %v949 = vpop.f32.mrf.mxu0
      %v950 = vadd.f32 0.0, %v949
      %v951 = vpop.f32.mrf.mxu0
      %v952 = vadd.f32 0.0, %v951
      %953 = vmatprep.mubr.f32.mxu0 0.0
      %954 = vmatmul.mubr.f32.gmra.mxu0 %v623
      %v955 = vpop.f32.mrf.mxu0
      %v956 = vadd.f32 0.0, %v955
      %v957 = vpop.f32.mrf.mxu0
      %v958 = vadd.f32 0.0, %v957
      %959 = vmatprep.mubr.f32.mxu0 0.0
      %960 = vmatmul.mubr.f32.gmra.mxu0 %v626
      %v961 = vpop.f32.mrf.mxu0
      %v962 = vadd.f32 0.0, %v961
      %v963 = vpop.f32.mrf.mxu0
      %v964 = vadd.f32 0.0, %v963
      %965 = vmatprep.mubr.f32.mxu0 0.0
      %966 = vmatmul.mubr.f32.gmra.mxu0 %v629
      %v967 = vpop.f32.mrf.mxu0
      %v968 = vadd.f32 0.0, %v967
      %v969 = vpop.f32.mrf.mxu0
      %v970 = vadd.f32 0.0, %v969
      %971 = vmatprep.mubr.f32.mxu0 0.0
      %972 = vmatmul.mubr.f32.gmra.mxu0 %v632
      %v973 = vpop.f32.mrf.mxu0
      %v974 = vadd.f32 0.0, %v973
      %v975 = vpop.f32.mrf.mxu0
      %v976 = vadd.f32 0.0, %v975
      %977 = vmatprep.mubr.f32.mxu0 0.0
      %978 = vmatmul.mubr.f32.gmra.mxu0 %v635
      %v979 = vpop.f32.mrf.mxu0
      %v980 = vadd.f32 0.0, %v979
      %v981 = vpop.f32.mrf.mxu0
      %v982 = vadd.f32 0.0, %v981
      %983 = vmatprep.mubr.f32.mxu0 0.0
      %984 = vmatmul.mubr.f32.gmra.mxu0 %v638
      %v985 = vpop.f32.mrf.mxu0
      %v986 = vadd.f32 0.0, %v985
      %v987 = vpop.f32.mrf.mxu0
      %v988 = vadd.f32 0.0, %v987
      %989 = vmatprep.mubr.f32.mxu0 0.0
      %990 = vmatmul.mubr.f32.gmra.mxu0 %v641
      %v991 = vpop.f32.mrf.mxu0
      %v992 = vadd.f32 0.0, %v991
      %v993 = vpop.f32.mrf.mxu0
      %v994 = vadd.f32 0.0, %v993
      %995 = vdwg.mxu0
      %v996 = vld [vmem:[#allocation2] sm:$0xff]
      %v997 = vld [vmem:[#allocation2 + $0x8] sm:$0xff]
      %v998 = vld [vmem:[#allocation2 + $0x10] sm:$0xff]
      %v999 = vld [vmem:[#allocation2 + $0x18] sm:$0xff]
      %v1000 = vld [vmem:[#allocation2 + $0x20] sm:$0xff]
      %v1001 = vld [vmem:[#allocation2 + $0x28] sm:$0xff]
      %v1002 = vld [vmem:[#allocation2 + $0x30] sm:$0xff]
      %v1003 = vld [vmem:[#allocation2 + $0x38] sm:$0xff]
      %v1004 = vld [vmem:[#allocation2 + $0x40] sm:$0xff]
      %v1005 = vld [vmem:[#allocation2 + $0x48] sm:$0xff]
      %v1006 = vld [vmem:[#allocation2 + $0x50] sm:$0xff]
      %v1007 = vld [vmem:[#allocation2 + $0x58] sm:$0xff]
      %v1008 = vld [vmem:[#allocation2 + $0x60] sm:$0xff]
      %v1009 = vld [vmem:[#allocation2 + $0x68] sm:$0xff]
      %v1010 = vld [vmem:[#allocation2 + $0x70] sm:$0xff]
      %v1011 = vld [vmem:[#allocation2 + $0x78] sm:$0xff]
      %v1012 = vld [vmem:[#allocation2 + $0x80] sm:$0xff]
      %v1013 = vld [vmem:[#allocation2 + $0x88] sm:$0xff]
      %v1014 = vld [vmem:[#allocation2 + $0x90] sm:$0xff]
      %v1015 = vld [vmem:[#allocation2 + $0x98] sm:$0xff]
      %v1016 = vld [vmem:[#allocation2 + $0xa0] sm:$0xff]
      %v1017 = vld [vmem:[#allocation2 + $0xa8] sm:$0xff]
      %v1018 = vld [vmem:[#allocation2 + $0xb0] sm:$0xff]
      %v1019 = vld [vmem:[#allocation2 + $0xb8] sm:$0xff]
      %v1020 = vld [vmem:[#allocation2 + $0xc0] sm:$0xff]
      %v1021 = vld [vmem:[#allocation2 + $0xc8] sm:$0xff]
      %v1022 = vld [vmem:[#allocation2 + $0xd0] sm:$0xff]
      %v1023 = vld [vmem:[#allocation2 + $0xd8] sm:$0xff]
      %v1024 = vld [vmem:[#allocation2 + $0xe0] sm:$0xff]
      %v1025 = vld [vmem:[#allocation2 + $0xe8] sm:$0xff]
      %v1026 = vld [vmem:[#allocation2 + $0xf0] sm:$0xff]
      %v1027 = vld [vmem:[#allocation2 + $0xf8] sm:$0xff]
      %v1028 = vmax.f32 %v806, %v808
      %1029 = vmax.xlane.f32.xlu0 %v1028
      %v1030 = vpop.xlane.xlu0 %1029
      %v1031 = vmax.f32 %v812, %v814
      %1032 = vmax.xlane.f32.xlu0 %v1031
      %v1033 = vpop.xlane.xlu0 %1032
      %v1034 = vmax.f32 %v818, %v820
      %1035 = vmax.xlane.f32.xlu0 %v1034
      %v1036 = vpop.xlane.xlu0 %1035
      %v1037 = vmax.f32 %v824, %v826
      %1038 = vmax.xlane.f32.xlu0 %v1037
      %v1039 = vpop.xlane.xlu0 %1038
      %v1040 = vmax.f32 %v830, %v832
      %1041 = vmax.xlane.f32.xlu0 %v1040
      %v1042 = vpop.xlane.xlu0 %1041
      %v1043 = vmax.f32 %v836, %v838
      %1044 = vmax.xlane.f32.xlu0 %v1043
      %v1045 = vpop.xlane.xlu0 %1044
      %v1046 = vmax.f32 %v842, %v844
      %1047 = vmax.xlane.f32.xlu0 %v1046
      %v1048 = vpop.xlane.xlu0 %1047
      %v1049 = vmax.f32 %v848, %v850
      %1050 = vmax.xlane.f32.xlu0 %v1049
      %v1051 = vpop.xlane.xlu0 %1050
      %v1052 = vmax.f32 %v854, %v856
      %1053 = vmax.xlane.f32.xlu0 %v1052
      %v1054 = vpop.xlane.xlu0 %1053
      %v1055 = vmax.f32 %v860, %v862
      %1056 = vmax.xlane.f32.xlu0 %v1055
      %v1057 = vpop.xlane.xlu0 %1056
      %v1058 = vmax.f32 %v866, %v868
      %1059 = vmax.xlane.f32.xlu0 %v1058
      %v1060 = vpop.xlane.xlu0 %1059
      %v1061 = vmax.f32 %v872, %v874
      %1062 = vmax.xlane.f32.xlu0 %v1061
      %v1063 = vpop.xlane.xlu0 %1062
      %v1064 = vmax.f32 %v878, %v880
      %1065 = vmax.xlane.f32.xlu0 %v1064
      %v1066 = vpop.xlane.xlu0 %1065
      %v1067 = vmax.f32 %v884, %v886
      %1068 = vmax.xlane.f32.xlu0 %v1067
      %v1069 = vpop.xlane.xlu0 %1068
      %v1070 = vmax.f32 %v890, %v892
      %1071 = vmax.xlane.f32.xlu0 %v1070
      %v1072 = vpop.xlane.xlu0 %1071
      %v1073 = vmax.f32 %v896, %v898
      %1074 = vmax.xlane.f32.xlu0 %v1073
      %v1075 = vpop.xlane.xlu0 %1074
      %v1076 = vmax.f32 %v902, %v904
      %1077 = vmax.xlane.f32.xlu0 %v1076
      %v1078 = vpop.xlane.xlu0 %1077
      %v1079 = vmax.f32 %v908, %v910
      %1080 = vmax.xlane.f32.xlu0 %v1079
      %v1081 = vpop.xlane.xlu0 %1080
      %v1082 = vmax.f32 %v914, %v916
      %1083 = vmax.xlane.f32.xlu0 %v1082
      %v1084 = vpop.xlane.xlu0 %1083
      %v1085 = vmax.f32 %v920, %v922
      %1086 = vmax.xlane.f32.xlu0 %v1085
      %v1087 = vpop.xlane.xlu0 %1086
      %v1088 = vmax.f32 %v926, %v928
      %1089 = vmax.xlane.f32.xlu0 %v1088
      %v1090 = vpop.xlane.xlu0 %1089
      %v1091 = vmax.f32 %v932, %v934
      %1092 = vmax.xlane.f32.xlu0 %v1091
      %v1093 = vpop.xlane.xlu0 %1092
      %v1094 = vmax.f32 %v938, %v940
      %1095 = vmax.xlane.f32.xlu0 %v1094
      %v1096 = vpop.xlane.xlu0 %1095
      %v1097 = vmax.f32 %v944, %v946
      %1098 = vmax.xlane.f32.xlu0 %v1097
      %v1099 = vpop.xlane.xlu0 %1098
      %v1100 = vmax.f32 %v950, %v952
      %1101 = vmax.xlane.f32.xlu0 %v1100
      %v1102 = vpop.xlane.xlu0 %1101
      %v1103 = vmax.f32 %v956, %v958
      %1104 = vmax.xlane.f32.xlu0 %v1103
      %v1105 = vpop.xlane.xlu0 %1104
      %v1106 = vmax.f32 %v962, %v964
      %1107 = vmax.xlane.f32.xlu0 %v1106
      %v1108 = vpop.xlane.xlu0 %1107
      %v1109 = vmax.f32 %v968, %v970
      %1110 = vmax.xlane.f32.xlu0 %v1109
      %v1111 = vpop.xlane.xlu0 %1110
      %v1112 = vmax.f32 %v974, %v976
      %1113 = vmax.xlane.f32.xlu0 %v1112
      %v1114 = vpop.xlane.xlu0 %1113
      %v1115 = vmax.f32 %v980, %v982
      %1116 = vmax.xlane.f32.xlu0 %v1115
      %v1117 = vpop.xlane.xlu0 %1116
      %v1118 = vmax.f32 %v986, %v988
      %1119 = vmax.xlane.f32.xlu0 %v1118
      %v1120 = vpop.xlane.xlu0 %1119
      %v1121 = vmax.f32 %v992, %v994
      %1122 = vmax.xlane.f32.xlu0 %v1121
      %v1123 = vpop.xlane.xlu0 %1122
      %v1124 = vmax.f32 %v996, %v1030
      %v1125 = vmax.f32 %v997, %v1033
      %v1126 = vmax.f32 %v998, %v1036
      %v1127 = vmax.f32 %v999, %v1039
      %v1128 = vmax.f32 %v1000, %v1042
      %v1129 = vmax.f32 %v1001, %v1045
      %v1130 = vmax.f32 %v1002, %v1048
      %v1131 = vmax.f32 %v1003, %v1051
      %v1132 = vmax.f32 %v1004, %v1054
      %v1133 = vmax.f32 %v1005, %v1057
      %v1134 = vmax.f32 %v1006, %v1060
      %v1135 = vmax.f32 %v1007, %v1063
      %v1136 = vmax.f32 %v1008, %v1066
      %v1137 = vmax.f32 %v1009, %v1069
      %v1138 = vmax.f32 %v1010, %v1072
      %v1139 = vmax.f32 %v1011, %v1075
      %v1140 = vmax.f32 %v1012, %v1078
      %v1141 = vmax.f32 %v1013, %v1081
      %v1142 = vmax.f32 %v1014, %v1084
      %v1143 = vmax.f32 %v1015, %v1087
      %v1144 = vmax.f32 %v1016, %v1090
      %v1145 = vmax.f32 %v1017, %v1093
      %v1146 = vmax.f32 %v1018, %v1096
      %v1147 = vmax.f32 %v1019, %v1099
      %v1148 = vmax.f32 %v1020, %v1102
      %v1149 = vmax.f32 %v1021, %v1105
      %v1150 = vmax.f32 %v1022, %v1108
      %v1151 = vmax.f32 %v1023, %v1111
      %v1152 = vmax.f32 %v1024, %v1114
      %v1153 = vmax.f32 %v1025, %v1117
      %v1154 = vmax.f32 %v1026, %v1120
      %v1155 = vmax.f32 %v1027, %v1123
      %v1156 = vsub.f32 %v996, %v1124
      %v1157 = vsub.f32 %v997, %v1125
      %v1158 = vsub.f32 %v998, %v1126
      %v1159 = vsub.f32 %v999, %v1127
      %v1160 = vsub.f32 %v1000, %v1128
      %v1161 = vsub.f32 %v1001, %v1129
      %v1162 = vsub.f32 %v1002, %v1130
      %v1163 = vsub.f32 %v1003, %v1131
      %v1164 = vsub.f32 %v1004, %v1132
      %v1165 = vsub.f32 %v1005, %v1133
      %v1166 = vsub.f32 %v1006, %v1134
      %v1167 = vsub.f32 %v1007, %v1135
      %v1168 = vsub.f32 %v1008, %v1136
      %v1169 = vsub.f32 %v1009, %v1137
      %v1170 = vsub.f32 %v1010, %v1138
      %v1171 = vsub.f32 %v1011, %v1139
      %v1172 = vsub.f32 %v1012, %v1140
      %v1173 = vsub.f32 %v1013, %v1141
      %v1174 = vsub.f32 %v1014, %v1142
      %v1175 = vsub.f32 %v1015, %v1143
      %v1176 = vsub.f32 %v1016, %v1144
      %v1177 = vsub.f32 %v1017, %v1145
      %v1178 = vsub.f32 %v1018, %v1146
      %v1179 = vsub.f32 %v1019, %v1147
      %v1180 = vsub.f32 %v1020, %v1148
      %v1181 = vsub.f32 %v1021, %v1149
      %v1182 = vsub.f32 %v1022, %v1150
      %v1183 = vsub.f32 %v1023, %v1151
      %v1184 = vsub.f32 %v1024, %v1152
      %v1185 = vsub.f32 %v1025, %v1153
      %v1186 = vsub.f32 %v1026, %v1154
      %v1187 = vsub.f32 %v1027, %v1155
      %v1188 = vmul.f32 %v1156, 1.442695
      %v1189 = vpow.pop %v1188
      %v1190 = vmul.f32 %v1157, 1.442695
      %v1191 = vpow.pop %v1190
      %v1192 = vmul.f32 %v1158, 1.442695
      %v1193 = vpow.pop %v1192
      %v1194 = vmul.f32 %v1159, 1.442695
      %v1195 = vpow.pop %v1194
      %v1196 = vmul.f32 %v1160, 1.442695
      %v1197 = vpow.pop %v1196
      %v1198 = vmul.f32 %v1161, 1.442695
      %v1199 = vpow.pop %v1198
      %v1200 = vmul.f32 %v1162, 1.442695
      %v1201 = vpow.pop %v1200
      %v1202 = vmul.f32 %v1163, 1.442695
      %v1203 = vpow.pop %v1202
      %v1204 = vmul.f32 %v1164, 1.442695
      %v1205 = vpow.pop %v1204
      %v1206 = vmul.f32 %v1165, 1.442695
      %v1207 = vpow.pop %v1206
      %v1208 = vmul.f32 %v1166, 1.442695
      %v1209 = vpow.pop %v1208
      %v1210 = vmul.f32 %v1167, 1.442695
      %v1211 = vpow.pop %v1210
      %v1212 = vmul.f32 %v1168, 1.442695
      %v1213 = vpow.pop %v1212
      %v1214 = vmul.f32 %v1169, 1.442695
      %v1215 = vpow.pop %v1214
      %v1216 = vmul.f32 %v1170, 1.442695
      %v1217 = vpow.pop %v1216
      %v1218 = vmul.f32 %v1171, 1.442695
      %v1219 = vpow.pop %v1218
      %v1220 = vmul.f32 %v1172, 1.442695
      %v1221 = vpow.pop %v1220
      %v1222 = vmul.f32 %v1173, 1.442695
      %v1223 = vpow.pop %v1222
      %v1224 = vmul.f32 %v1174, 1.442695
      %v1225 = vpow.pop %v1224
      %v1226 = vmul.f32 %v1175, 1.442695
      %v1227 = vpow.pop %v1226
      %v1228 = vmul.f32 %v1176, 1.442695
      %v1229 = vpow.pop %v1228
      %v1230 = vmul.f32 %v1177, 1.442695
      %v1231 = vpow.pop %v1230
      %v1232 = vmul.f32 %v1178, 1.442695
      %v1233 = vpow.pop %v1232
      %v1234 = vmul.f32 %v1179, 1.442695
      %v1235 = vpow.pop %v1234
      %v1236 = vmul.f32 %v1180, 1.442695
      %v1237 = vpow.pop %v1236
      %v1238 = vmul.f32 %v1181, 1.442695
      %v1239 = vpow.pop %v1238
      %v1240 = vmul.f32 %v1182, 1.442695
      %v1241 = vpow.pop %v1240
      %v1242 = vmul.f32 %v1183, 1.442695
      %v1243 = vpow.pop %v1242
      %v1244 = vmul.f32 %v1184, 1.442695
      %v1245 = vpow.pop %v1244
      %v1246 = vmul.f32 %v1185, 1.442695
      %v1247 = vpow.pop %v1246
      %v1248 = vmul.f32 %v1186, 1.442695
      %v1249 = vpow.pop %v1248
      %v1250 = vmul.f32 %v1187, 1.442695
      %v1251 = vpow.pop %v1250
      %1253 = vset.pattern.permute.xlu0 0
      %1254 = vperm.xlu0 %1253, %v1124
      %v1255 = vpop.permute.xlu0 %1254
      %1258 = vset.pattern.permute.xlu0 0
      %1259 = vperm.xlu0 %1258, %v1125
      %v1260 = vpop.permute.xlu0 %1259
      %1263 = vset.pattern.permute.xlu0 0
      %1264 = vperm.xlu0 %1263, %v1126
      %v1265 = vpop.permute.xlu0 %1264
      %1268 = vset.pattern.permute.xlu0 0
      %1269 = vperm.xlu0 %1268, %v1127
      %v1270 = vpop.permute.xlu0 %1269
      %1273 = vset.pattern.permute.xlu0 0
      %1274 = vperm.xlu0 %1273, %v1128
      %v1275 = vpop.permute.xlu0 %1274
      %1278 = vset.pattern.permute.xlu0 0
      %1279 = vperm.xlu0 %1278, %v1129
      %v1280 = vpop.permute.xlu0 %1279
      %1283 = vset.pattern.permute.xlu0 0
      %1284 = vperm.xlu0 %1283, %v1130
      %v1285 = vpop.permute.xlu0 %1284
      %1288 = vset.pattern.permute.xlu0 0
      %1289 = vperm.xlu0 %1288, %v1131
      %v1290 = vpop.permute.xlu0 %1289
      %1293 = vset.pattern.permute.xlu0 0
      %1294 = vperm.xlu0 %1293, %v1132
      %v1295 = vpop.permute.xlu0 %1294
      %1298 = vset.pattern.permute.xlu0 0
      %1299 = vperm.xlu0 %1298, %v1133
      %v1300 = vpop.permute.xlu0 %1299
      %1303 = vset.pattern.permute.xlu0 0
      %1304 = vperm.xlu0 %1303, %v1134
      %v1305 = vpop.permute.xlu0 %1304
      %1308 = vset.pattern.permute.xlu0 0
      %1309 = vperm.xlu0 %1308, %v1135
      %v1310 = vpop.permute.xlu0 %1309
      %1313 = vset.pattern.permute.xlu0 0
      %1314 = vperm.xlu0 %1313, %v1136
      %v1315 = vpop.permute.xlu0 %1314
      %1318 = vset.pattern.permute.xlu0 0
      %1319 = vperm.xlu0 %1318, %v1137
      %v1320 = vpop.permute.xlu0 %1319
      %1323 = vset.pattern.permute.xlu0 0
      %1324 = vperm.xlu0 %1323, %v1138
      %v1325 = vpop.permute.xlu0 %1324
      %1328 = vset.pattern.permute.xlu0 0
      %1329 = vperm.xlu0 %1328, %v1139
      %v1330 = vpop.permute.xlu0 %1329
      %1333 = vset.pattern.permute.xlu0 0
      %1334 = vperm.xlu0 %1333, %v1140
      %v1335 = vpop.permute.xlu0 %1334
      %1338 = vset.pattern.permute.xlu0 0
      %1339 = vperm.xlu0 %1338, %v1141
      %v1340 = vpop.permute.xlu0 %1339
      %1343 = vset.pattern.permute.xlu0 0
      %1344 = vperm.xlu0 %1343, %v1142
      %v1345 = vpop.permute.xlu0 %1344
      %1348 = vset.pattern.permute.xlu0 0
      %1349 = vperm.xlu0 %1348, %v1143
      %v1350 = vpop.permute.xlu0 %1349
      %1353 = vset.pattern.permute.xlu0 0
      %1354 = vperm.xlu0 %1353, %v1144
      %v1355 = vpop.permute.xlu0 %1354
      %1358 = vset.pattern.permute.xlu0 0
      %1359 = vperm.xlu0 %1358, %v1145
      %v1360 = vpop.permute.xlu0 %1359
      %1363 = vset.pattern.permute.xlu0 0
      %1364 = vperm.xlu0 %1363, %v1146
      %v1365 = vpop.permute.xlu0 %1364
      %1368 = vset.pattern.permute.xlu0 0
      %1369 = vperm.xlu0 %1368, %v1147
      %v1370 = vpop.permute.xlu0 %1369
      %1373 = vset.pattern.permute.xlu0 0
      %1374 = vperm.xlu0 %1373, %v1148
      %v1375 = vpop.permute.xlu0 %1374
      %1378 = vset.pattern.permute.xlu0 0
      %1379 = vperm.xlu0 %1378, %v1149
      %v1380 = vpop.permute.xlu0 %1379
      %1383 = vset.pattern.permute.xlu0 0
      %1384 = vperm.xlu0 %1383, %v1150
      %v1385 = vpop.permute.xlu0 %1384
      %1388 = vset.pattern.permute.xlu0 0
      %1389 = vperm.xlu0 %1388, %v1151
      %v1390 = vpop.permute.xlu0 %1389
      %1393 = vset.pattern.permute.xlu0 0
      %1394 = vperm.xlu0 %1393, %v1152
      %v1395 = vpop.permute.xlu0 %1394
      %1398 = vset.pattern.permute.xlu0 0
      %1399 = vperm.xlu0 %1398, %v1153
      %v1400 = vpop.permute.xlu0 %1399
      %1403 = vset.pattern.permute.xlu0 0
      %1404 = vperm.xlu0 %1403, %v1154
      %v1405 = vpop.permute.xlu0 %1404
      %1408 = vset.pattern.permute.xlu0 0
      %1409 = vperm.xlu0 %1408, %v1155
      %v1410 = vpop.permute.xlu0 %1409
      %v1412 = vsub.f32 %v806, %v1255
      %v1413 = vsub.f32 %v808, %v1255
      %v1414 = vsub.f32 %v812, %v1260
      %v1415 = vsub.f32 %v814, %v1260
      %v1416 = vsub.f32 %v818, %v1265
      %v1417 = vsub.f32 %v820, %v1265
      %v1418 = vsub.f32 %v824, %v1270
      %v1419 = vsub.f32 %v826, %v1270
      %v1420 = vsub.f32 %v830, %v1275
      %v1421 = vsub.f32 %v832, %v1275
      %v1422 = vsub.f32 %v836, %v1280
      %v1423 = vsub.f32 %v838, %v1280
      %v1424 = vsub.f32 %v842, %v1285
      %v1425 = vsub.f32 %v844, %v1285
      %v1426 = vsub.f32 %v848, %v1290
      %v1427 = vsub.f32 %v850, %v1290
      %v1428 = vsub.f32 %v854, %v1295
      %v1429 = vsub.f32 %v856, %v1295
      %v1430 = vsub.f32 %v860, %v1300
      %v1431 = vsub.f32 %v862, %v1300
      %v1432 = vsub.f32 %v866, %v1305
      %v1433 = vsub.f32 %v868, %v1305
      %v1434 = vsub.f32 %v872, %v1310
      %v1435 = vsub.f32 %v874, %v1310
      %v1436 = vsub.f32 %v878, %v1315
      %v1437 = vsub.f32 %v880, %v1315
      %v1438 = vsub.f32 %v884, %v1320
      %v1439 = vsub.f32 %v886, %v1320
      %v1440 = vsub.f32 %v890, %v1325
      %v1441 = vsub.f32 %v892, %v1325
      %v1442 = vsub.f32 %v896, %v1330
      %v1443 = vsub.f32 %v898, %v1330
      %v1444 = vsub.f32 %v902, %v1335
      %v1445 = vsub.f32 %v904, %v1335
      %v1446 = vsub.f32 %v908, %v1340
      %v1447 = vsub.f32 %v910, %v1340
      %v1448 = vsub.f32 %v914, %v1345
      %v1449 = vsub.f32 %v916, %v1345
      %v1450 = vsub.f32 %v920, %v1350
      %v1451 = vsub.f32 %v922, %v1350
      %v1452 = vsub.f32 %v926, %v1355
      %v1453 = vsub.f32 %v928, %v1355
      %v1454 = vsub.f32 %v932, %v1360
      %v1455 = vsub.f32 %v934, %v1360
      %v1456 = vsub.f32 %v938, %v1365
      %v1457 = vsub.f32 %v940, %v1365
      %v1458 = vsub.f32 %v944, %v1370
      %v1459 = vsub.f32 %v946, %v1370
      %v1460 = vsub.f32 %v950, %v1375
      %v1461 = vsub.f32 %v952, %v1375
      %v1462 = vsub.f32 %v956, %v1380
      %v1463 = vsub.f32 %v958, %v1380
      %v1464 = vsub.f32 %v962, %v1385
      %v1465 = vsub.f32 %v964, %v1385
      %v1466 = vsub.f32 %v968, %v1390
      %v1467 = vsub.f32 %v970, %v1390
      %v1468 = vsub.f32 %v974, %v1395
      %v1469 = vsub.f32 %v976, %v1395
      %v1470 = vsub.f32 %v980, %v1400
      %v1471 = vsub.f32 %v982, %v1400
      %v1472 = vsub.f32 %v986, %v1405
      %v1473 = vsub.f32 %v988, %v1405
      %v1474 = vsub.f32 %v992, %v1410
      %v1475 = vsub.f32 %v994, %v1410
      %v1476 = vmul.f32 %v1412, 1.442695
      %v1477 = vpow.pop %v1476
      %v1478 = vmul.f32 %v1413, 1.442695
      %v1479 = vpow.pop %v1478
      %v1480 = vmul.f32 %v1414, 1.442695
      %v1481 = vpow.pop %v1480
      %v1482 = vmul.f32 %v1415, 1.442695
      %v1483 = vpow.pop %v1482
      %v1484 = vmul.f32 %v1416, 1.442695
      %v1485 = vpow.pop %v1484
      %v1486 = vmul.f32 %v1417, 1.442695
      %v1487 = vpow.pop %v1486
      %v1488 = vmul.f32 %v1418, 1.442695
      %v1489 = vpow.pop %v1488
      %v1490 = vmul.f32 %v1419, 1.442695
      %v1491 = vpow.pop %v1490
      %v1492 = vmul.f32 %v1420, 1.442695
      %v1493 = vpow.pop %v1492
      %v1494 = vmul.f32 %v1421, 1.442695
      %v1495 = vpow.pop %v1494
      %v1496 = vmul.f32 %v1422, 1.442695
      %v1497 = vpow.pop %v1496
      %v1498 = vmul.f32 %v1423, 1.442695
      %v1499 = vpow.pop %v1498
      %v1500 = vmul.f32 %v1424, 1.442695
      %v1501 = vpow.pop %v1500
      %v1502 = vmul.f32 %v1425, 1.442695
      %v1503 = vpow.pop %v1502
      %v1504 = vmul.f32 %v1426, 1.442695
      %v1505 = vpow.pop %v1504
      %v1506 = vmul.f32 %v1427, 1.442695
      %v1507 = vpow.pop %v1506
      %v1508 = vmul.f32 %v1428, 1.442695
      %v1509 = vpow.pop %v1508
      %v1510 = vmul.f32 %v1429, 1.442695
      %v1511 = vpow.pop %v1510
      %v1512 = vmul.f32 %v1430, 1.442695
      %v1513 = vpow.pop %v1512
      %v1514 = vmul.f32 %v1431, 1.442695
      %v1515 = vpow.pop %v1514
      %v1516 = vmul.f32 %v1432, 1.442695
      %v1517 = vpow.pop %v1516
      %v1518 = vmul.f32 %v1433, 1.442695
      %v1519 = vpow.pop %v1518
      %v1520 = vmul.f32 %v1434, 1.442695
      %v1521 = vpow.pop %v1520
      %v1522 = vmul.f32 %v1435, 1.442695
      %v1523 = vpow.pop %v1522
      %v1524 = vmul.f32 %v1436, 1.442695
      %v1525 = vpow.pop %v1524
      %v1526 = vmul.f32 %v1437, 1.442695
      %v1527 = vpow.pop %v1526
      %v1528 = vmul.f32 %v1438, 1.442695
      %v1529 = vpow.pop %v1528
      %v1530 = vmul.f32 %v1439, 1.442695
      %v1531 = vpow.pop %v1530
      %v1532 = vmul.f32 %v1440, 1.442695
      %v1533 = vpow.pop %v1532
      %v1534 = vmul.f32 %v1441, 1.442695
      %v1535 = vpow.pop %v1534
      %v1536 = vmul.f32 %v1442, 1.442695
      %v1537 = vpow.pop %v1536
      %v1538 = vmul.f32 %v1443, 1.442695
      %v1539 = vpow.pop %v1538
      %v1540 = vmul.f32 %v1444, 1.442695
      %v1541 = vpow.pop %v1540
      %v1542 = vmul.f32 %v1445, 1.442695
      %v1543 = vpow.pop %v1542
      %v1544 = vmul.f32 %v1446, 1.442695
      %v1545 = vpow.pop %v1544
      %v1546 = vmul.f32 %v1447, 1.442695
      %v1547 = vpow.pop %v1546
      %v1548 = vmul.f32 %v1448, 1.442695
      %v1549 = vpow.pop %v1548
      %v1550 = vmul.f32 %v1449, 1.442695
      %v1551 = vpow.pop %v1550
      %v1552 = vmul.f32 %v1450, 1.442695
      %v1553 = vpow.pop %v1552
      %v1554 = vmul.f32 %v1451, 1.442695
      %v1555 = vpow.pop %v1554
      %v1556 = vmul.f32 %v1452, 1.442695
      %v1557 = vpow.pop %v1556
      %v1558 = vmul.f32 %v1453, 1.442695
      %v1559 = vpow.pop %v1558
      %v1560 = vmul.f32 %v1454, 1.442695
      %v1561 = vpow.pop %v1560
      %v1562 = vmul.f32 %v1455, 1.442695
      %v1563 = vpow.pop %v1562
      %v1564 = vmul.f32 %v1456, 1.442695
      %v1565 = vpow.pop %v1564
      %v1566 = vmul.f32 %v1457, 1.442695
      %v1567 = vpow.pop %v1566
      %v1568 = vmul.f32 %v1458, 1.442695
      %v1569 = vpow.pop %v1568
      %v1570 = vmul.f32 %v1459, 1.442695
      %v1571 = vpow.pop %v1570
      %v1572 = vmul.f32 %v1460, 1.442695
      %v1573 = vpow.pop %v1572
      %v1574 = vmul.f32 %v1461, 1.442695
      %v1575 = vpow.pop %v1574
      %v1576 = vmul.f32 %v1462, 1.442695
      %v1577 = vpow.pop %v1576
      %v1578 = vmul.f32 %v1463, 1.442695
      %v1579 = vpow.pop %v1578
      %v1580 = vmul.f32 %v1464, 1.442695
      %v1581 = vpow.pop %v1580
      %v1582 = vmul.f32 %v1465, 1.442695
      %v1583 = vpow.pop %v1582
      %v1584 = vmul.f32 %v1466, 1.442695
      %v1585 = vpow.pop %v1584
      %v1586 = vmul.f32 %v1467, 1.442695
      %v1587 = vpow.pop %v1586
      %v1588 = vmul.f32 %v1468, 1.442695
      %v1589 = vpow.pop %v1588
      %v1590 = vmul.f32 %v1469, 1.442695
      %v1591 = vpow.pop %v1590
      %v1592 = vmul.f32 %v1470, 1.442695
      %v1593 = vpow.pop %v1592
      %v1594 = vmul.f32 %v1471, 1.442695
      %v1595 = vpow.pop %v1594
      %v1596 = vmul.f32 %v1472, 1.442695
      %v1597 = vpow.pop %v1596
      %v1598 = vmul.f32 %v1473, 1.442695
      %v1599 = vpow.pop %v1598
      %v1600 = vmul.f32 %v1474, 1.442695
      %v1601 = vpow.pop %v1600
      %v1602 = vmul.f32 %v1475, 1.442695
      %v1603 = vpow.pop %v1602
      %v1604 = vld [vmem:[#allocation3] sm:$0xff]
      %v1605 = vld [vmem:[#allocation3 + $0x8] sm:$0xff]
      %v1606 = vld [vmem:[#allocation3 + $0x10] sm:$0xff]
      %v1607 = vld [vmem:[#allocation3 + $0x18] sm:$0xff]
      %v1608 = vld [vmem:[#allocation3 + $0x20] sm:$0xff]
      %v1609 = vld [vmem:[#allocation3 + $0x28] sm:$0xff]
      %v1610 = vld [vmem:[#allocation3 + $0x30] sm:$0xff]
      %v1611 = vld [vmem:[#allocation3 + $0x38] sm:$0xff]
      %v1612 = vld [vmem:[#allocation3 + $0x40] sm:$0xff]
      %v1613 = vld [vmem:[#allocation3 + $0x48] sm:$0xff]
      %v1614 = vld [vmem:[#allocation3 + $0x50] sm:$0xff]
      %v1615 = vld [vmem:[#allocation3 + $0x58] sm:$0xff]
      %v1616 = vld [vmem:[#allocation3 + $0x60] sm:$0xff]
      %v1617 = vld [vmem:[#allocation3 + $0x68] sm:$0xff]
      %v1618 = vld [vmem:[#allocation3 + $0x70] sm:$0xff]
      %v1619 = vld [vmem:[#allocation3 + $0x78] sm:$0xff]
      %v1620 = vld [vmem:[#allocation3 + $0x80] sm:$0xff]
      %v1621 = vld [vmem:[#allocation3 + $0x88] sm:$0xff]
      %v1622 = vld [vmem:[#allocation3 + $0x90] sm:$0xff]
      %v1623 = vld [vmem:[#allocation3 + $0x98] sm:$0xff]
      %v1624 = vld [vmem:[#allocation3 + $0xa0] sm:$0xff]
      %v1625 = vld [vmem:[#allocation3 + $0xa8] sm:$0xff]
      %v1626 = vld [vmem:[#allocation3 + $0xb0] sm:$0xff]
      %v1627 = vld [vmem:[#allocation3 + $0xb8] sm:$0xff]
      %v1628 = vld [vmem:[#allocation3 + $0xc0] sm:$0xff]
      %v1629 = vld [vmem:[#allocation3 + $0xc8] sm:$0xff]
      %v1630 = vld [vmem:[#allocation3 + $0xd0] sm:$0xff]
      %v1631 = vld [vmem:[#allocation3 + $0xd8] sm:$0xff]
      %v1632 = vld [vmem:[#allocation3 + $0xe0] sm:$0xff]
      %v1633 = vld [vmem:[#allocation3 + $0xe8] sm:$0xff]
      %v1634 = vld [vmem:[#allocation3 + $0xf0] sm:$0xff]
      %v1635 = vld [vmem:[#allocation3 + $0xf8] sm:$0xff]
      %v1636 = vmul.f32 %v1189, %v1604
      %v1637 = vmul.f32 %v1191, %v1605
      %v1638 = vmul.f32 %v1193, %v1606
      %v1639 = vmul.f32 %v1195, %v1607
      %v1640 = vmul.f32 %v1197, %v1608
      %v1641 = vmul.f32 %v1199, %v1609
      %v1642 = vmul.f32 %v1201, %v1610
      %v1643 = vmul.f32 %v1203, %v1611
      %v1644 = vmul.f32 %v1205, %v1612
      %v1645 = vmul.f32 %v1207, %v1613
      %v1646 = vmul.f32 %v1209, %v1614
      %v1647 = vmul.f32 %v1211, %v1615
      %v1648 = vmul.f32 %v1213, %v1616
      %v1649 = vmul.f32 %v1215, %v1617
      %v1650 = vmul.f32 %v1217, %v1618
      %v1651 = vmul.f32 %v1219, %v1619
      %v1652 = vmul.f32 %v1221, %v1620
      %v1653 = vmul.f32 %v1223, %v1621
      %v1654 = vmul.f32 %v1225, %v1622
      %v1655 = vmul.f32 %v1227, %v1623
      %v1656 = vmul.f32 %v1229, %v1624
      %v1657 = vmul.f32 %v1231, %v1625
      %v1658 = vmul.f32 %v1233, %v1626
      %v1659 = vmul.f32 %v1235, %v1627
      %v1660 = vmul.f32 %v1237, %v1628
      %v1661 = vmul.f32 %v1239, %v1629
      %v1662 = vmul.f32 %v1241, %v1630
      %v1663 = vmul.f32 %v1243, %v1631
      %v1664 = vmul.f32 %v1245, %v1632
      %v1665 = vmul.f32 %v1247, %v1633
      %v1666 = vmul.f32 %v1249, %v1634
      %v1667 = vmul.f32 %v1251, %v1635
      %v1668 = vadd.f32 %v1477, %v1479
      %1669 = vadd.xlane.f32.xlu0 %v1668
      %v1670 = vpop.xlane.xlu0 %1669
      %v1671 = vadd.f32 %v1481, %v1483
      %1672 = vadd.xlane.f32.xlu0 %v1671
      %v1673 = vpop.xlane.xlu0 %1672
      %v1674 = vadd.f32 %v1485, %v1487
      %1675 = vadd.xlane.f32.xlu0 %v1674
      %v1676 = vpop.xlane.xlu0 %1675
      %v1677 = vadd.f32 %v1489, %v1491
      %1678 = vadd.xlane.f32.xlu0 %v1677
      %v1679 = vpop.xlane.xlu0 %1678
      %v1680 = vadd.f32 %v1493, %v1495
      %1681 = vadd.xlane.f32.xlu0 %v1680
      %v1682 = vpop.xlane.xlu0 %1681
      %v1683 = vadd.f32 %v1497, %v1499
      %1684 = vadd.xlane.f32.xlu0 %v1683
      %v1685 = vpop.xlane.xlu0 %1684
      %v1686 = vadd.f32 %v1501, %v1503
      %1687 = vadd.xlane.f32.xlu0 %v1686
      %v1688 = vpop.xlane.xlu0 %1687
      %v1689 = vadd.f32 %v1505, %v1507
      %1690 = vadd.xlane.f32.xlu0 %v1689
      %v1691 = vpop.xlane.xlu0 %1690
      %v1692 = vadd.f32 %v1509, %v1511
      %1693 = vadd.xlane.f32.xlu0 %v1692
      %v1694 = vpop.xlane.xlu0 %1693
      %v1695 = vadd.f32 %v1513, %v1515
      %1696 = vadd.xlane.f32.xlu0 %v1695
      %v1697 = vpop.xlane.xlu0 %1696
      %v1698 = vadd.f32 %v1517, %v1519
      %1699 = vadd.xlane.f32.xlu0 %v1698
      %v1700 = vpop.xlane.xlu0 %1699
      %v1701 = vadd.f32 %v1521, %v1523
      %1702 = vadd.xlane.f32.xlu0 %v1701
      %v1703 = vpop.xlane.xlu0 %1702
      %v1704 = vadd.f32 %v1525, %v1527
      %1705 = vadd.xlane.f32.xlu0 %v1704
      %v1706 = vpop.xlane.xlu0 %1705
      %v1707 = vadd.f32 %v1529, %v1531
      %1708 = vadd.xlane.f32.xlu0 %v1707
      %v1709 = vpop.xlane.xlu0 %1708
      %v1710 = vadd.f32 %v1533, %v1535
      %1711 = vadd.xlane.f32.xlu0 %v1710
      %v1712 = vpop.xlane.xlu0 %1711
      %v1713 = vadd.f32 %v1537, %v1539
      %1714 = vadd.xlane.f32.xlu0 %v1713
      %v1715 = vpop.xlane.xlu0 %1714
      %v1716 = vadd.f32 %v1541, %v1543
      %1717 = vadd.xlane.f32.xlu0 %v1716
      %v1718 = vpop.xlane.xlu0 %1717
      %v1719 = vadd.f32 %v1545, %v1547
      %1720 = vadd.xlane.f32.xlu0 %v1719
      %v1721 = vpop.xlane.xlu0 %1720
      %v1722 = vadd.f32 %v1549, %v1551
      %1723 = vadd.xlane.f32.xlu0 %v1722
      %v1724 = vpop.xlane.xlu0 %1723
      %v1725 = vadd.f32 %v1553, %v1555
      %1726 = vadd.xlane.f32.xlu0 %v1725
      %v1727 = vpop.xlane.xlu0 %1726
      %v1728 = vadd.f32 %v1557, %v1559
      %1729 = vadd.xlane.f32.xlu0 %v1728
      %v1730 = vpop.xlane.xlu0 %1729
      %v1731 = vadd.f32 %v1561, %v1563
      %1732 = vadd.xlane.f32.xlu0 %v1731
      %v1733 = vpop.xlane.xlu0 %1732
      %v1734 = vadd.f32 %v1565, %v1567
      %1735 = vadd.xlane.f32.xlu0 %v1734
      %v1736 = vpop.xlane.xlu0 %1735
      %v1737 = vadd.f32 %v1569, %v1571
      %1738 = vadd.xlane.f32.xlu0 %v1737
      %v1739 = vpop.xlane.xlu0 %1738
      %v1740 = vadd.f32 %v1573, %v1575
      %1741 = vadd.xlane.f32.xlu0 %v1740
      %v1742 = vpop.xlane.xlu0 %1741
      %v1743 = vadd.f32 %v1577, %v1579
      %1744 = vadd.xlane.f32.xlu0 %v1743
      %v1745 = vpop.xlane.xlu0 %1744
      %v1746 = vadd.f32 %v1581, %v1583
      %1747 = vadd.xlane.f32.xlu0 %v1746
      %v1748 = vpop.xlane.xlu0 %1747
      %v1749 = vadd.f32 %v1585, %v1587
      %1750 = vadd.xlane.f32.xlu0 %v1749
      %v1751 = vpop.xlane.xlu0 %1750
      %v1752 = vadd.f32 %v1589, %v1591
      %1753 = vadd.xlane.f32.xlu0 %v1752
      %v1754 = vpop.xlane.xlu0 %1753
      %v1755 = vadd.f32 %v1593, %v1595
      %1756 = vadd.xlane.f32.xlu0 %v1755
      %v1757 = vpop.xlane.xlu0 %1756
      %v1758 = vadd.f32 %v1597, %v1599
      %1759 = vadd.xlane.f32.xlu0 %v1758
      %v1760 = vpop.xlane.xlu0 %1759
      %v1761 = vadd.f32 %v1601, %v1603
      %1762 = vadd.xlane.f32.xlu0 %v1761
      %v1763 = vpop.xlane.xlu0 %1762
      %v1764 = vadd.f32 %v1636, %v1670
      %v1765 = vadd.f32 %v1637, %v1673
      %v1766 = vadd.f32 %v1638, %v1676
      %v1767 = vadd.f32 %v1639, %v1679
      %v1768 = vadd.f32 %v1640, %v1682
      %v1769 = vadd.f32 %v1641, %v1685
      %v1770 = vadd.f32 %v1642, %v1688
      %v1771 = vadd.f32 %v1643, %v1691
      %v1772 = vadd.f32 %v1644, %v1694
      %v1773 = vadd.f32 %v1645, %v1697
      %v1774 = vadd.f32 %v1646, %v1700
      %v1775 = vadd.f32 %v1647, %v1703
      %v1776 = vadd.f32 %v1648, %v1706
      %v1777 = vadd.f32 %v1649, %v1709
      %v1778 = vadd.f32 %v1650, %v1712
      %v1779 = vadd.f32 %v1651, %v1715
      %v1780 = vadd.f32 %v1652, %v1718
      %v1781 = vadd.f32 %v1653, %v1721
      %v1782 = vadd.f32 %v1654, %v1724
      %v1783 = vadd.f32 %v1655, %v1727
      %v1784 = vadd.f32 %v1656, %v1730
      %v1785 = vadd.f32 %v1657, %v1733
      %v1786 = vadd.f32 %v1658, %v1736
      %v1787 = vadd.f32 %v1659, %v1739
      %v1788 = vadd.f32 %v1660, %v1742
      %v1789 = vadd.f32 %v1661, %v1745
      %v1790 = vadd.f32 %v1662, %v1748
      %v1791 = vadd.f32 %v1663, %v1751
      %v1792 = vadd.f32 %v1664, %v1754
      %v1793 = vadd.f32 %v1665, %v1757
      %v1794 = vadd.f32 %v1666, %v1760
      %v1795 = vadd.f32 %v1667, %v1763
      %vm1796 = vcmask 7168
      %1797 = vst.msk [vmem:[#allocation3] sm:$0xff] %vm1796, %v1764
      %1798 = vst.msk [vmem:[#allocation3 + $0x8] sm:$0xff] %vm1796, %v1765
      %1799 = vst.msk [vmem:[#allocation3 + $0x10] sm:$0xff] %vm1796, %v1766
      %1800 = vst.msk [vmem:[#allocation3 + $0x18] sm:$0xff] %vm1796, %v1767
      %1801 = vst.msk [vmem:[#allocation3 + $0x20] sm:$0xff] %vm1796, %v1768
      %1802 = vst.msk [vmem:[#allocation3 + $0x28] sm:$0xff] %vm1796, %v1769
      %1803 = vst.msk [vmem:[#allocation3 + $0x30] sm:$0xff] %vm1796, %v1770
      %1804 = vst.msk [vmem:[#allocation3 + $0x38] sm:$0xff] %vm1796, %v1771
      %1805 = vst.msk [vmem:[#allocation3 + $0x40] sm:$0xff] %vm1796, %v1772
      %1806 = vst.msk [vmem:[#allocation3 + $0x48] sm:$0xff] %vm1796, %v1773
      %1807 = vst.msk [vmem:[#allocation3 + $0x50] sm:$0xff] %vm1796, %v1774
      %1808 = vst.msk [vmem:[#allocation3 + $0x58] sm:$0xff] %vm1796, %v1775
      %1809 = vst.msk [vmem:[#allocation3 + $0x60] sm:$0xff] %vm1796, %v1776
      %1810 = vst.msk [vmem:[#allocation3 + $0x68] sm:$0xff] %vm1796, %v1777
      %1811 = vst.msk [vmem:[#allocation3 + $0x70] sm:$0xff] %vm1796, %v1778
      %1812 = vst.msk [vmem:[#allocation3 + $0x78] sm:$0xff] %vm1796, %v1779
      %1813 = vst.msk [vmem:[#allocation3 + $0x80] sm:$0xff] %vm1796, %v1780
      %1814 = vst.msk [vmem:[#allocation3 + $0x88] sm:$0xff] %vm1796, %v1781
      %1815 = vst.msk [vmem:[#allocation3 + $0x90] sm:$0xff] %vm1796, %v1782
      %1816 = vst.msk [vmem:[#allocation3 + $0x98] sm:$0xff] %vm1796, %v1783
      %1817 = vst.msk [vmem:[#allocation3 + $0xa0] sm:$0xff] %vm1796, %v1784
      %1818 = vst.msk [vmem:[#allocation3 + $0xa8] sm:$0xff] %vm1796, %v1785
      %1819 = vst.msk [vmem:[#allocation3 + $0xb0] sm:$0xff] %vm1796, %v1786
      %1820 = vst.msk [vmem:[#allocation3 + $0xb8] sm:$0xff] %vm1796, %v1787
      %1821 = vst.msk [vmem:[#allocation3 + $0xc0] sm:$0xff] %vm1796, %v1788
      %1822 = vst.msk [vmem:[#allocation3 + $0xc8] sm:$0xff] %vm1796, %v1789
      %1823 = vst.msk [vmem:[#allocation3 + $0xd0] sm:$0xff] %vm1796, %v1790
      %1824 = vst.msk [vmem:[#allocation3 + $0xd8] sm:$0xff] %vm1796, %v1791
      %1825 = vst.msk [vmem:[#allocation3 + $0xe0] sm:$0xff] %vm1796, %v1792
      %1826 = vst.msk [vmem:[#allocation3 + $0xe8] sm:$0xff] %vm1796, %v1793
      %1827 = vst.msk [vmem:[#allocation3 + $0xf0] sm:$0xff] %vm1796, %v1794
      %1828 = vst.msk [vmem:[#allocation3 + $0xf8] sm:$0xff] %vm1796, %v1795
      %v1829 = vld [vmem:[#allocation4] sm:$0xff]
      %v1830 = vld [vmem:[#allocation4 + $0x8] sm:$0xff]
      %v1831 = vld [vmem:[#allocation4 + $0x10] sm:$0xff]
      %v1832 = vld [vmem:[#allocation4 + $0x18] sm:$0xff]
      %v1833 = vld [vmem:[#allocation4 + $0x20] sm:$0xff]
      %v1834 = vld [vmem:[#allocation4 + $0x28] sm:$0xff]
      %v1835 = vld [vmem:[#allocation4 + $0x30] sm:$0xff]
      %v1836 = vld [vmem:[#allocation4 + $0x38] sm:$0xff]
      %v1837 = vld [vmem:[#allocation4 + $0x40] sm:$0xff]
      %v1838 = vld [vmem:[#allocation4 + $0x48] sm:$0xff]
      %v1839 = vld [vmem:[#allocation4 + $0x50] sm:$0xff]
      %v1840 = vld [vmem:[#allocation4 + $0x58] sm:$0xff]
      %v1841 = vld [vmem:[#allocation4 + $0x60] sm:$0xff]
      %v1842 = vld [vmem:[#allocation4 + $0x68] sm:$0xff]
      %v1843 = vld [vmem:[#allocation4 + $0x70] sm:$0xff]
      %v1844 = vld [vmem:[#allocation4 + $0x78] sm:$0xff]
      %v1845 = vld [vmem:[#allocation4 + $0x80] sm:$0xff]
      %v1846 = vld [vmem:[#allocation4 + $0x88] sm:$0xff]
      %v1847 = vld [vmem:[#allocation4 + $0x90] sm:$0xff]
      %v1848 = vld [vmem:[#allocation4 + $0x98] sm:$0xff]
      %v1849 = vld [vmem:[#allocation4 + $0xa0] sm:$0xff]
      %v1850 = vld [vmem:[#allocation4 + $0xa8] sm:$0xff]
      %v1851 = vld [vmem:[#allocation4 + $0xb0] sm:$0xff]
      %v1852 = vld [vmem:[#allocation4 + $0xb8] sm:$0xff]
      %v1853 = vld [vmem:[#allocation4 + $0xc0] sm:$0xff]
      %v1854 = vld [vmem:[#allocation4 + $0xc8] sm:$0xff]
      %v1855 = vld [vmem:[#allocation4 + $0xd0] sm:$0xff]
      %v1856 = vld [vmem:[#allocation4 + $0xd8] sm:$0xff]
      %v1857 = vld [vmem:[#allocation4 + $0xe0] sm:$0xff]
      %v1858 = vld [vmem:[#allocation4 + $0xe8] sm:$0xff]
      %v1859 = vld [vmem:[#allocation4 + $0xf0] sm:$0xff]
      %v1860 = vld [vmem:[#allocation4 + $0xf8] sm:$0xff]
      %1862 = vset.pattern.permute.xlu0 0
      %1863 = vperm.xlu0 %1862, %v1189
      %v1864 = vpop.permute.xlu0 %1863
      %1867 = vset.pattern.permute.xlu0 0
      %1868 = vperm.xlu0 %1867, %v1191
      %v1869 = vpop.permute.xlu0 %1868
      %1872 = vset.pattern.permute.xlu0 0
      %1873 = vperm.xlu0 %1872, %v1193
      %v1874 = vpop.permute.xlu0 %1873
      %1877 = vset.pattern.permute.xlu0 0
      %1878 = vperm.xlu0 %1877, %v1195
      %v1879 = vpop.permute.xlu0 %1878
      %1882 = vset.pattern.permute.xlu0 0
      %1883 = vperm.xlu0 %1882, %v1197
      %v1884 = vpop.permute.xlu0 %1883
      %1887 = vset.pattern.permute.xlu0 0
      %1888 = vperm.xlu0 %1887, %v1199
      %v1889 = vpop.permute.xlu0 %1888
      %1892 = vset.pattern.permute.xlu0 0
      %1893 = vperm.xlu0 %1892, %v1201
      %v1894 = vpop.permute.xlu0 %1893
      %1897 = vset.pattern.permute.xlu0 0
      %1898 = vperm.xlu0 %1897, %v1203
      %v1899 = vpop.permute.xlu0 %1898
      %1902 = vset.pattern.permute.xlu0 0
      %1903 = vperm.xlu0 %1902, %v1205
      %v1904 = vpop.permute.xlu0 %1903
      %1907 = vset.pattern.permute.xlu0 0
      %1908 = vperm.xlu0 %1907, %v1207
      %v1909 = vpop.permute.xlu0 %1908
      %1912 = vset.pattern.permute.xlu0 0
      %1913 = vperm.xlu0 %1912, %v1209
      %v1914 = vpop.permute.xlu0 %1913
      %1917 = vset.pattern.permute.xlu0 0
      %1918 = vperm.xlu0 %1917, %v1211
      %v1919 = vpop.permute.xlu0 %1918
      %1922 = vset.pattern.permute.xlu0 0
      %1923 = vperm.xlu0 %1922, %v1213
      %v1924 = vpop.permute.xlu0 %1923
      %1927 = vset.pattern.permute.xlu0 0
      %1928 = vperm.xlu0 %1927, %v1215
      %v1929 = vpop.permute.xlu0 %1928
      %1932 = vset.pattern.permute.xlu0 0
      %1933 = vperm.xlu0 %1932, %v1217
      %v1934 = vpop.permute.xlu0 %1933
      %1937 = vset.pattern.permute.xlu0 0
      %1938 = vperm.xlu0 %1937, %v1219
      %v1939 = vpop.permute.xlu0 %1938
      %1942 = vset.pattern.permute.xlu0 0
      %1943 = vperm.xlu0 %1942, %v1221
      %v1944 = vpop.permute.xlu0 %1943
      %1947 = vset.pattern.permute.xlu0 0
      %1948 = vperm.xlu0 %1947, %v1223
      %v1949 = vpop.permute.xlu0 %1948
      %1952 = vset.pattern.permute.xlu0 0
      %1953 = vperm.xlu0 %1952, %v1225
      %v1954 = vpop.permute.xlu0 %1953
      %1957 = vset.pattern.permute.xlu0 0
      %1958 = vperm.xlu0 %1957, %v1227
      %v1959 = vpop.permute.xlu0 %1958
      %1962 = vset.pattern.permute.xlu0 0
      %1963 = vperm.xlu0 %1962, %v1229
      %v1964 = vpop.permute.xlu0 %1963
      %1967 = vset.pattern.permute.xlu0 0
      %1968 = vperm.xlu0 %1967, %v1231
      %v1969 = vpop.permute.xlu0 %1968
      %1972 = vset.pattern.permute.xlu0 0
      %1973 = vperm.xlu0 %1972, %v1233
      %v1974 = vpop.permute.xlu0 %1973
      %1977 = vset.pattern.permute.xlu0 0
      %1978 = vperm.xlu0 %1977, %v1235
      %v1979 = vpop.permute.xlu0 %1978
      %1982 = vset.pattern.permute.xlu0 0
      %1983 = vperm.xlu0 %1982, %v1237
      %v1984 = vpop.permute.xlu0 %1983
      %1987 = vset.pattern.permute.xlu0 0
      %1988 = vperm.xlu0 %1987, %v1239
      %v1989 = vpop.permute.xlu0 %1988
      %1992 = vset.pattern.permute.xlu0 0
      %1993 = vperm.xlu0 %1992, %v1241
      %v1994 = vpop.permute.xlu0 %1993
      %1997 = vset.pattern.permute.xlu0 0
      %1998 = vperm.xlu0 %1997, %v1243
      %v1999 = vpop.permute.xlu0 %1998
      %2002 = vset.pattern.permute.xlu0 0
      %2003 = vperm.xlu0 %2002, %v1245
      %v2004 = vpop.permute.xlu0 %2003
      %2007 = vset.pattern.permute.xlu0 0
      %2008 = vperm.xlu0 %2007, %v1247
      %v2009 = vpop.permute.xlu0 %2008
      %2012 = vset.pattern.permute.xlu0 0
      %2013 = vperm.xlu0 %2012, %v1249
      %v2014 = vpop.permute.xlu0 %2013
      %2017 = vset.pattern.permute.xlu0 0
      %2018 = vperm.xlu0 %2017, %v1251
      %v2019 = vpop.permute.xlu0 %2018
      %v2021 = vmul.f32 %v1864, %v1829
      %v2022 = vmul.f32 %v1869, %v1830
      %v2023 = vmul.f32 %v1874, %v1831
      %v2024 = vmul.f32 %v1879, %v1832
      %v2025 = vmul.f32 %v1884, %v1833
      %v2026 = vmul.f32 %v1889, %v1834
      %v2027 = vmul.f32 %v1894, %v1835
      %v2028 = vmul.f32 %v1899, %v1836
      %v2029 = vmul.f32 %v1904, %v1837
      %v2030 = vmul.f32 %v1909, %v1838
      %v2031 = vmul.f32 %v1914, %v1839
      %v2032 = vmul.f32 %v1919, %v1840
      %v2033 = vmul.f32 %v1924, %v1841
      %v2034 = vmul.f32 %v1929, %v1842
      %v2035 = vmul.f32 %v1934, %v1843
      %v2036 = vmul.f32 %v1939, %v1844
      %v2037 = vmul.f32 %v1944, %v1845
      %v2038 = vmul.f32 %v1949, %v1846
      %v2039 = vmul.f32 %v1954, %v1847
      %v2040 = vmul.f32 %v1959, %v1848
      %v2041 = vmul.f32 %v1964, %v1849
      %v2042 = vmul.f32 %v1969, %v1850
      %v2043 = vmul.f32 %v1974, %v1851
      %v2044 = vmul.f32 %v1979, %v1852
      %v2045 = vmul.f32 %v1984, %v1853
      %v2046 = vmul.f32 %v1989, %v1854
      %v2047 = vmul.f32 %v1994, %v1855
      %v2048 = vmul.f32 %v1999, %v1856
      %v2049 = vmul.f32 %v2004, %v1857
      %v2050 = vmul.f32 %v2009, %v1858
      %v2051 = vmul.f32 %v2014, %v1859
      %v2052 = vmul.f32 %v2019, %v1860
      %v2053 = vld [vmem:[%s332] sm:$0xff]
      %v2054 = vld [vmem:[%s332 + $0x8] sm:$0xff]
      %v2055 = vld [vmem:[%s332 + $0x10] sm:$0xff]
      %v2056 = vld [vmem:[%s332 + $0x18] sm:$0xff]
      %v2057 = vld [vmem:[%s332 + $0x20] sm:$0xff]
      %v2058 = vld [vmem:[%s332 + $0x28] sm:$0xff]
      %v2059 = vld [vmem:[%s332 + $0x30] sm:$0xff]
      %v2060 = vld [vmem:[%s332 + $0x38] sm:$0xff]
      %v2061 = vld [vmem:[%s332 + $0x40] sm:$0xff]
      %v2062 = vld [vmem:[%s332 + $0x48] sm:$0xff]
      %v2063 = vld [vmem:[%s332 + $0x50] sm:$0xff]
      %v2064 = vld [vmem:[%s332 + $0x58] sm:$0xff]
      %v2065 = vld [vmem:[%s332 + $0x60] sm:$0xff]
      %v2066 = vld [vmem:[%s332 + $0x68] sm:$0xff]
      %v2067 = vld [vmem:[%s332 + $0x70] sm:$0xff]
      %v2068 = vld [vmem:[%s332 + $0x78] sm:$0xff]
      %v2069 = vld [vmem:[%s332 + $0x80] sm:$0xff]
      %v2070 = vld [vmem:[%s332 + $0x88] sm:$0xff]
      %v2071 = vld [vmem:[%s332 + $0x90] sm:$0xff]
      %v2072 = vld [vmem:[%s332 + $0x98] sm:$0xff]
      %v2073 = vld [vmem:[%s332 + $0xa0] sm:$0xff]
      %v2074 = vld [vmem:[%s332 + $0xa8] sm:$0xff]
      %v2075 = vld [vmem:[%s332 + $0xb0] sm:$0xff]
      %v2076 = vld [vmem:[%s332 + $0xb8] sm:$0xff]
      %v2077 = vld [vmem:[%s332 + $0xc0] sm:$0xff]
      %v2078 = vld [vmem:[%s332 + $0xc8] sm:$0xff]
      %v2079 = vld [vmem:[%s332 + $0xd0] sm:$0xff]
      %v2080 = vld [vmem:[%s332 + $0xd8] sm:$0xff]
      %v2081 = vld [vmem:[%s332 + $0xe0] sm:$0xff]
      %v2082 = vld [vmem:[%s332 + $0xe8] sm:$0xff]
      %v2083 = vld [vmem:[%s332 + $0xf0] sm:$0xff]
      %v2084 = vld [vmem:[%s332 + $0xf8] sm:$0xff]
      %2085 = vmatprep.subr.mxu0 0.0
      %2086 = vmatpush1.msra.mxu0 %v2068
      %2087 = vmatprep.subr.mxu0 0.0
      %2088 = vmatpush1.msra.mxu0 %v2067
      %2089 = vmatprep.subr.mxu0 0.0
      %2090 = vmatpush1.msra.mxu0 %v2066
      %2091 = vmatprep.subr.mxu0 0.0
      %2092 = vmatpush1.msra.mxu0 %v2065
      %2093 = vmatprep.subr.mxu0 0.0
      %2094 = vmatpush1.msra.mxu0 %v2064
      %2095 = vmatprep.subr.mxu0 0.0
      %2096 = vmatpush1.msra.mxu0 %v2063
      %2097 = vmatprep.subr.mxu0 0.0
      %2098 = vmatpush1.msra.mxu0 %v2062
      %2099 = vmatprep.subr.mxu0 0.0
      %2100 = vmatpush1.msra.mxu0 %v2061
      %2101 = vmatprep.subr.mxu0 0.0
      %2102 = vmatpush1.msra.mxu0 %v2060
      %2103 = vmatprep.subr.mxu0 0.0
      %2104 = vmatpush1.msra.mxu0 %v2059
      %2105 = vmatprep.subr.mxu0 0.0
      %2106 = vmatpush1.msra.mxu0 %v2058
      %2107 = vmatprep.subr.mxu0 0.0
      %2108 = vmatpush1.msra.mxu0 %v2057
      %2109 = vmatprep.subr.mxu0 0.0
      %2110 = vmatpush1.msra.mxu0 %v2056
      %2111 = vmatprep.subr.mxu0 0.0
      %2112 = vmatpush1.msra.mxu0 %v2055
      %2113 = vmatprep.subr.mxu0 0.0
      %2114 = vmatpush1.msra.mxu0 %v2054
      %2115 = vmatprep.subr.mxu0 0.0
      %2116 = vmatpush1.msra.mxu0 %v2053
      %2117 = vmatprep.subr.mxu0 0.0
      %2118 = vmatpush2.msra.mxu0 %v2084
      %2119 = vmatprep.subr.mxu0 0.0
      %2120 = vmatpush2.msra.mxu0 %v2083
      %2121 = vmatprep.subr.mxu0 0.0
      %2122 = vmatpush2.msra.mxu0 %v2082
      %2123 = vmatprep.subr.mxu0 0.0
      %2124 = vmatpush2.msra.mxu0 %v2081
      %2125 = vmatprep.subr.mxu0 0.0
      %2126 = vmatpush2.msra.mxu0 %v2080
      %2127 = vmatprep.subr.mxu0 0.0
      %2128 = vmatpush2.msra.mxu0 %v2079
      %2129 = vmatprep.subr.mxu0 0.0
      %2130 = vmatpush2.msra.mxu0 %v2078
      %2131 = vmatprep.subr.mxu0 0.0
      %2132 = vmatpush2.msra.mxu0 %v2077
      %2133 = vmatprep.subr.mxu0 0.0
      %2134 = vmatpush2.msra.mxu0 %v2076
      %2135 = vmatprep.subr.mxu0 0.0
      %2136 = vmatpush2.msra.mxu0 %v2075
      %2137 = vmatprep.subr.mxu0 0.0
      %2138 = vmatpush2.msra.mxu0 %v2074
      %2139 = vmatprep.subr.mxu0 0.0
      %2140 = vmatpush2.msra.mxu0 %v2073
      %2141 = vmatprep.subr.mxu0 0.0
      %2142 = vmatpush2.msra.mxu0 %v2072
      %2143 = vmatprep.subr.mxu0 0.0
      %2144 = vmatpush2.msra.mxu0 %v2071
      %2145 = vmatprep.subr.mxu0 0.0
      %2146 = vmatpush2.msra.mxu0 %v2070
      %2147 = vmatprep.subr.mxu0 0.0
      %2148 = vmatpush2.msra.mxu0 %v2069
      %2149 = vmatprep.mubr.f32.mxu0 %v1479
      %2150 = vmatmul.mubr.f32.gmra.mxu0 %v1477
      %v2151 = vpop.f32.mrf.mxu0
      %v2152 = vadd.f32 0.0, %v2151
      %v2153 = vpop.f32.mrf.mxu0
      %2154 = vmatprep.mubr.f32.mxu0 %v1483
      %2155 = vmatmul.mubr.f32.gmra.mxu0 %v1481
      %v2156 = vpop.f32.mrf.mxu0
      %v2157 = vadd.f32 0.0, %v2156
      %v2158 = vpop.f32.mrf.mxu0
      %2159 = vmatprep.mubr.f32.mxu0 %v1487
      %2160 = vmatmul.mubr.f32.gmra.mxu0 %v1485
      %v2161 = vpop.f32.mrf.mxu0
      %v2162 = vadd.f32 0.0, %v2161
      %v2163 = vpop.f32.mrf.mxu0
      %2164 = vmatprep.mubr.f32.mxu0 %v1491
      %2165 = vmatmul.mubr.f32.gmra.mxu0 %v1489
      %v2166 = vpop.f32.mrf.mxu0
      %v2167 = vadd.f32 0.0, %v2166
      %v2168 = vpop.f32.mrf.mxu0
      %2169 = vmatprep.mubr.f32.mxu0 %v1495
      %2170 = vmatmul.mubr.f32.gmra.mxu0 %v1493
      %v2171 = vpop.f32.mrf.mxu0
      %v2172 = vadd.f32 0.0, %v2171
      %v2173 = vpop.f32.mrf.mxu0
      %2174 = vmatprep.mubr.f32.mxu0 %v1499
      %2175 = vmatmul.mubr.f32.gmra.mxu0 %v1497
      %v2176 = vpop.f32.mrf.mxu0
      %v2177 = vadd.f32 0.0, %v2176
      %v2178 = vpop.f32.mrf.mxu0
      %2179 = vmatprep.mubr.f32.mxu0 %v1503
      %2180 = vmatmul.mubr.f32.gmra.mxu0 %v1501
      %v2181 = vpop.f32.mrf.mxu0
      %v2182 = vadd.f32 0.0, %v2181
      %v2183 = vpop.f32.mrf.mxu0
      %2184 = vmatprep.mubr.f32.mxu0 %v1507
      %2185 = vmatmul.mubr.f32.gmra.mxu0 %v1505
      %v2186 = vpop.f32.mrf.mxu0
      %v2187 = vadd.f32 0.0, %v2186
      %v2188 = vpop.f32.mrf.mxu0
      %2189 = vmatprep.mubr.f32.mxu0 %v1511
      %2190 = vmatmul.mubr.f32.gmra.mxu0 %v1509
      %v2191 = vpop.f32.mrf.mxu0
      %v2192 = vadd.f32 0.0, %v2191
      %v2193 = vpop.f32.mrf.mxu0
      %2194 = vmatprep.mubr.f32.mxu0 %v1515
      %2195 = vmatmul.mubr.f32.gmra.mxu0 %v1513
      %v2196 = vpop.f32.mrf.mxu0
      %v2197 = vadd.f32 0.0, %v2196
      %v2198 = vpop.f32.mrf.mxu0
      %2199 = vmatprep.mubr.f32.mxu0 %v1519
      %2200 = vmatmul.mubr.f32.gmra.mxu0 %v1517
      %v2201 = vpop.f32.mrf.mxu0
      %v2202 = vadd.f32 0.0, %v2201
      %v2203 = vpop.f32.mrf.mxu0
      %2204 = vmatprep.mubr.f32.mxu0 %v1523
      %2205 = vmatmul.mubr.f32.gmra.mxu0 %v1521
      %v2206 = vpop.f32.mrf.mxu0
      %v2207 = vadd.f32 0.0, %v2206
      %v2208 = vpop.f32.mrf.mxu0
      %2209 = vmatprep.mubr.f32.mxu0 %v1527
      %2210 = vmatmul.mubr.f32.gmra.mxu0 %v1525
      %v2211 = vpop.f32.mrf.mxu0
      %v2212 = vadd.f32 0.0, %v2211
      %v2213 = vpop.f32.mrf.mxu0
      %2214 = vmatprep.mubr.f32.mxu0 %v1531
      %2215 = vmatmul.mubr.f32.gmra.mxu0 %v1529
      %v2216 = vpop.f32.mrf.mxu0
      %v2217 = vadd.f32 0.0, %v2216
      %v2218 = vpop.f32.mrf.mxu0
      %2219 = vmatprep.mubr.f32.mxu0 %v1535
      %2220 = vmatmul.mubr.f32.gmra.mxu0 %v1533
      %v2221 = vpop.f32.mrf.mxu0
      %v2222 = vadd.f32 0.0, %v2221
      %v2223 = vpop.f32.mrf.mxu0
      %2224 = vmatprep.mubr.f32.mxu0 %v1539
      %2225 = vmatmul.mubr.f32.gmra.mxu0 %v1537
      %v2226 = vpop.f32.mrf.mxu0
      %v2227 = vadd.f32 0.0, %v2226
      %v2228 = vpop.f32.mrf.mxu0
      %2229 = vmatprep.mubr.f32.mxu0 %v1543
      %2230 = vmatmul.mubr.f32.gmra.mxu0 %v1541
      %v2231 = vpop.f32.mrf.mxu0
      %v2232 = vadd.f32 0.0, %v2231
      %v2233 = vpop.f32.mrf.mxu0
      %2234 = vmatprep.mubr.f32.mxu0 %v1547
      %2235 = vmatmul.mubr.f32.gmra.mxu0 %v1545
      %v2236 = vpop.f32.mrf.mxu0
      %v2237 = vadd.f32 0.0, %v2236
      %v2238 = vpop.f32.mrf.mxu0
      %2239 = vmatprep.mubr.f32.mxu0 %v1551
      %2240 = vmatmul.mubr.f32.gmra.mxu0 %v1549
      %v2241 = vpop.f32.mrf.mxu0
      %v2242 = vadd.f32 0.0, %v2241
      %v2243 = vpop.f32.mrf.mxu0
      %2244 = vmatprep.mubr.f32.mxu0 %v1555
      %2245 = vmatmul.mubr.f32.gmra.mxu0 %v1553
      %v2246 = vpop.f32.mrf.mxu0
      %v2247 = vadd.f32 0.0, %v2246
      %v2248 = vpop.f32.mrf.mxu0
      %2249 = vmatprep.mubr.f32.mxu0 %v1559
      %2250 = vmatmul.mubr.f32.gmra.mxu0 %v1557
      %v2251 = vpop.f32.mrf.mxu0
      %v2252 = vadd.f32 0.0, %v2251
      %v2253 = vpop.f32.mrf.mxu0
      %2254 = vmatprep.mubr.f32.mxu0 %v1563
      %2255 = vmatmul.mubr.f32.gmra.mxu0 %v1561
      %v2256 = vpop.f32.mrf.mxu0
      %v2257 = vadd.f32 0.0, %v2256
      %v2258 = vpop.f32.mrf.mxu0
      %2259 = vmatprep.mubr.f32.mxu0 %v1567
      %2260 = vmatmul.mubr.f32.gmra.mxu0 %v1565
      %v2261 = vpop.f32.mrf.mxu0
      %v2262 = vadd.f32 0.0, %v2261
      %v2263 = vpop.f32.mrf.mxu0
      %2264 = vmatprep.mubr.f32.mxu0 %v1571
      %2265 = vmatmul.mubr.f32.gmra.mxu0 %v1569
      %v2266 = vpop.f32.mrf.mxu0
      %v2267 = vadd.f32 0.0, %v2266
      %v2268 = vpop.f32.mrf.mxu0
      %2269 = vmatprep.mubr.f32.mxu0 %v1575
      %2270 = vmatmul.mubr.f32.gmra.mxu0 %v1573
      %v2271 = vpop.f32.mrf.mxu0
      %v2272 = vadd.f32 0.0, %v2271
      %v2273 = vpop.f32.mrf.mxu0
      %2274 = vmatprep.mubr.f32.mxu0 %v1579
      %2275 = vmatmul.mubr.f32.gmra.mxu0 %v1577
      %v2276 = vpop.f32.mrf.mxu0
      %v2277 = vadd.f32 0.0, %v2276
      %v2278 = vpop.f32.mrf.mxu0
      %2279 = vmatprep.mubr.f32.mxu0 %v1583
      %2280 = vmatmul.mubr.f32.gmra.mxu0 %v1581
      %v2281 = vpop.f32.mrf.mxu0
      %v2282 = vadd.f32 0.0, %v2281
      %v2283 = vpop.f32.mrf.mxu0
      %2284 = vmatprep.mubr.f32.mxu0 %v1587
      %2285 = vmatmul.mubr.f32.gmra.mxu0 %v1585
      %v2286 = vpop.f32.mrf.mxu0
      %v2287 = vadd.f32 0.0, %v2286
      %v2288 = vpop.f32.mrf.mxu0
      %2289 = vmatprep.mubr.f32.mxu0 %v1591
      %2290 = vmatmul.mubr.f32.gmra.mxu0 %v1589
      %v2291 = vpop.f32.mrf.mxu0
      %v2292 = vadd.f32 0.0, %v2291
      %v2293 = vpop.f32.mrf.mxu0
      %2294 = vmatprep.mubr.f32.mxu0 %v1595
      %2295 = vmatmul.mubr.f32.gmra.mxu0 %v1593
      %v2296 = vpop.f32.mrf.mxu0
      %v2297 = vadd.f32 0.0, %v2296
      %v2298 = vpop.f32.mrf.mxu0
      %2299 = vmatprep.mubr.f32.mxu0 %v1599
      %2300 = vmatmul.mubr.f32.gmra.mxu0 %v1597
      %v2301 = vpop.f32.mrf.mxu0
      %v2302 = vadd.f32 0.0, %v2301
      %v2303 = vpop.f32.mrf.mxu0
      %2304 = vmatprep.mubr.f32.mxu0 %v1603
      %2305 = vmatmul.mubr.f32.gmra.mxu0 %v1601
      %v2306 = vpop.f32.mrf.mxu0
      %v2307 = vadd.f32 0.0, %v2306
      %v2308 = vpop.f32.mrf.mxu0
      %2309 = vdwg.mxu0
      %v2310 = vadd.f32 %v2021, %v2152
      %v2311 = vadd.f32 %v2022, %v2157
      %v2312 = vadd.f32 %v2023, %v2162
      %v2313 = vadd.f32 %v2024, %v2167
      %v2314 = vadd.f32 %v2025, %v2172
      %v2315 = vadd.f32 %v2026, %v2177
      %v2316 = vadd.f32 %v2027, %v2182
      %v2317 = vadd.f32 %v2028, %v2187
      %v2318 = vadd.f32 %v2029, %v2192
      %v2319 = vadd.f32 %v2030, %v2197
      %v2320 = vadd.f32 %v2031, %v2202
      %v2321 = vadd.f32 %v2032, %v2207
      %v2322 = vadd.f32 %v2033, %v2212
      %v2323 = vadd.f32 %v2034, %v2217
      %v2324 = vadd.f32 %v2035, %v2222
      %v2325 = vadd.f32 %v2036, %v2227
      %v2326 = vadd.f32 %v2037, %v2232
      %v2327 = vadd.f32 %v2038, %v2237
      %v2328 = vadd.f32 %v2039, %v2242
      %v2329 = vadd.f32 %v2040, %v2247
      %v2330 = vadd.f32 %v2041, %v2252
      %v2331 = vadd.f32 %v2042, %v2257
      %v2332 = vadd.f32 %v2043, %v2262
      %v2333 = vadd.f32 %v2044, %v2267
      %v2334 = vadd.f32 %v2045, %v2272
      %v2335 = vadd.f32 %v2046, %v2277
      %v2336 = vadd.f32 %v2047, %v2282
      %v2337 = vadd.f32 %v2048, %v2287
      %v2338 = vadd.f32 %v2049, %v2292
      %v2339 = vadd.f32 %v2050, %v2297
      %v2340 = vadd.f32 %v2051, %v2302
      %v2341 = vadd.f32 %v2052, %v2307
      %2342 = vst.msk [vmem:[#allocation4] sm:$0xff] %vm546, %v2310
      %2343 = vst.msk [vmem:[#allocation4 + $0x8] sm:$0xff] %vm546, %v2311
      %2344 = vst.msk [vmem:[#allocation4 + $0x10] sm:$0xff] %vm546, %v2312
      %2345 = vst.msk [vmem:[#allocation4 + $0x18] sm:$0xff] %vm546, %v2313
      %2346 = vst.msk [vmem:[#allocation4 + $0x20] sm:$0xff] %vm546, %v2314
      %2347 = vst.msk [vmem:[#allocation4 + $0x28] sm:$0xff] %vm546, %v2315
      %2348 = vst.msk [vmem:[#allocation4 + $0x30] sm:$0xff] %vm546, %v2316
      %2349 = vst.msk [vmem:[#allocation4 + $0x38] sm:$0xff] %vm546, %v2317
      %2350 = vst.msk [vmem:[#allocation4 + $0x40] sm:$0xff] %vm546, %v2318
      %2351 = vst.msk [vmem:[#allocation4 + $0x48] sm:$0xff] %vm546, %v2319
      %2352 = vst.msk [vmem:[#allocation4 + $0x50] sm:$0xff] %vm546, %v2320
      %2353 = vst.msk [vmem:[#allocation4 + $0x58] sm:$0xff] %vm546, %v2321
      %2354 = vst.msk [vmem:[#allocation4 + $0x60] sm:$0xff] %vm546, %v2322
      %2355 = vst.msk [vmem:[#allocation4 + $0x68] sm:$0xff] %vm546, %v2323
      %2356 = vst.msk [vmem:[#allocation4 + $0x70] sm:$0xff] %vm546, %v2324
      %2357 = vst.msk [vmem:[#allocation4 + $0x78] sm:$0xff] %vm546, %v2325
      %2358 = vst.msk [vmem:[#allocation4 + $0x80] sm:$0xff] %vm546, %v2326
      %2359 = vst.msk [vmem:[#allocation4 + $0x88] sm:$0xff] %vm546, %v2327
      %2360 = vst.msk [vmem:[#allocation4 + $0x90] sm:$0xff] %vm546, %v2328
      %2361 = vst.msk [vmem:[#allocation4 + $0x98] sm:$0xff] %vm546, %v2329
      %2362 = vst.msk [vmem:[#allocation4 + $0xa0] sm:$0xff] %vm546, %v2330
      %2363 = vst.msk [vmem:[#allocation4 + $0xa8] sm:$0xff] %vm546, %v2331
      %2364 = vst.msk [vmem:[#allocation4 + $0xb0] sm:$0xff] %vm546, %v2332
      %2365 = vst.msk [vmem:[#allocation4 + $0xb8] sm:$0xff] %vm546, %v2333
      %2366 = vst.msk [vmem:[#allocation4 + $0xc0] sm:$0xff] %vm546, %v2334
      %2367 = vst.msk [vmem:[#allocation4 + $0xc8] sm:$0xff] %vm546, %v2335
      %2368 = vst.msk [vmem:[#allocation4 + $0xd0] sm:$0xff] %vm546, %v2336
      %2369 = vst.msk [vmem:[#allocation4 + $0xd8] sm:$0xff] %vm546, %v2337
      %2370 = vst.msk [vmem:[#allocation4 + $0xe0] sm:$0xff] %vm546, %v2338
      %2371 = vst.msk [vmem:[#allocation4 + $0xe8] sm:$0xff] %vm546, %v2339
      %2372 = vst.msk [vmem:[#allocation4 + $0xf0] sm:$0xff] %vm546, %v2340
      %2373 = vst.msk [vmem:[#allocation4 + $0xf8] sm:$0xff] %vm546, %v2341
      %2374 = vst.msk [vmem:[#allocation2] sm:$0xff] %vm1796, %v1124
      %2375 = vst.msk [vmem:[#allocation2 + $0x8] sm:$0xff] %vm1796, %v1125
      %2376 = vst.msk [vmem:[#allocation2 + $0x10] sm:$0xff] %vm1796, %v1126
      %2377 = vst.msk [vmem:[#allocation2 + $0x18] sm:$0xff] %vm1796, %v1127
      %2378 = vst.msk [vmem:[#allocation2 + $0x20] sm:$0xff] %vm1796, %v1128
      %2379 = vst.msk [vmem:[#allocation2 + $0x28] sm:$0xff] %vm1796, %v1129
      %2380 = vst.msk [vmem:[#allocation2 + $0x30] sm:$0xff] %vm1796, %v1130
      %2381 = vst.msk [vmem:[#allocation2 + $0x38] sm:$0xff] %vm1796, %v1131
      %2382 = vst.msk [vmem:[#allocation2 + $0x40] sm:$0xff] %vm1796, %v1132
      %2383 = vst.msk [vmem:[#allocation2 + $0x48] sm:$0xff] %vm1796, %v1133
      %2384 = vst.msk [vmem:[#allocation2 + $0x50] sm:$0xff] %vm1796, %v1134
      %2385 = vst.msk [vmem:[#allocation2 + $0x58] sm:$0xff] %vm1796, %v1135
      %2386 = vst.msk [vmem:[#allocation2 + $0x60] sm:$0xff] %vm1796, %v1136
      %2387 = vst.msk [vmem:[#allocation2 + $0x68] sm:$0xff] %vm1796, %v1137
      %2388 = vst.msk [vmem:[#allocation2 + $0x70] sm:$0xff] %vm1796, %v1138
      %2389 = vst.msk [vmem:[#allocation2 + $0x78] sm:$0xff] %vm1796, %v1139
      %2390 = vst.msk [vmem:[#allocation2 + $0x80] sm:$0xff] %vm1796, %v1140
      %2391 = vst.msk [vmem:[#allocation2 + $0x88] sm:$0xff] %vm1796, %v1141
      %2392 = vst.msk [vmem:[#allocation2 + $0x90] sm:$0xff] %vm1796, %v1142
      %2393 = vst.msk [vmem:[#allocation2 + $0x98] sm:$0xff] %vm1796, %v1143
      %2394 = vst.msk [vmem:[#allocation2 + $0xa0] sm:$0xff] %vm1796, %v1144
      %2395 = vst.msk [vmem:[#allocation2 + $0xa8] sm:$0xff] %vm1796, %v1145
      %2396 = vst.msk [vmem:[#allocation2 + $0xb0] sm:$0xff] %vm1796, %v1146
      %2397 = vst.msk [vmem:[#allocation2 + $0xb8] sm:$0xff] %vm1796, %v1147
      %2398 = vst.msk [vmem:[#allocation2 + $0xc0] sm:$0xff] %vm1796, %v1148
      %2399 = vst.msk [vmem:[#allocation2 + $0xc8] sm:$0xff] %vm1796, %v1149
      %2400 = vst.msk [vmem:[#allocation2 + $0xd0] sm:$0xff] %vm1796, %v1150
      %2401 = vst.msk [vmem:[#allocation2 + $0xd8] sm:$0xff] %vm1796, %v1151
      %2402 = vst.msk [vmem:[#allocation2 + $0xe0] sm:$0xff] %vm1796, %v1152
      %2403 = vst.msk [vmem:[#allocation2 + $0xe8] sm:$0xff] %vm1796, %v1153
      %2404 = vst.msk [vmem:[#allocation2 + $0xf0] sm:$0xff] %vm1796, %v1154
      %2405 = vst.msk [vmem:[#allocation2 + $0xf8] sm:$0xff] %vm1796, %v1155
      // Predicated region
      $region37: #{tpu_custom_call.1} parent=31 // pred_check
        %p2406 = pneg %p348
      $region38: #{tpu_custom_call.1} parent=31 // pred_check_branch
        %2408 = sbr.rel (%p2406) target = $region40
      $region39: #{tpu_custom_call.1} parent=31 // pred_region
        %v2409 = vld [vmem:[#allocation3] sm:$0xff]
        %v2410 = vld [vmem:[#allocation3 + $0x8] sm:$0xff]
        %v2411 = vld [vmem:[#allocation3 + $0x10] sm:$0xff]
        %v2412 = vld [vmem:[#allocation3 + $0x18] sm:$0xff]
        %v2413 = vld [vmem:[#allocation3 + $0x20] sm:$0xff]
        %v2414 = vld [vmem:[#allocation3 + $0x28] sm:$0xff]
        %v2415 = vld [vmem:[#allocation3 + $0x30] sm:$0xff]
        %v2416 = vld [vmem:[#allocation3 + $0x38] sm:$0xff]
        %v2417 = vld [vmem:[#allocation3 + $0x40] sm:$0xff]
        %v2418 = vld [vmem:[#allocation3 + $0x48] sm:$0xff]
        %v2419 = vld [vmem:[#allocation3 + $0x50] sm:$0xff]
        %v2420 = vld [vmem:[#allocation3 + $0x58] sm:$0xff]
        %v2421 = vld [vmem:[#allocation3 + $0x60] sm:$0xff]
        %v2422 = vld [vmem:[#allocation3 + $0x68] sm:$0xff]
        %v2423 = vld [vmem:[#allocation3 + $0x70] sm:$0xff]
        %v2424 = vld [vmem:[#allocation3 + $0x78] sm:$0xff]
        %v2425 = vld [vmem:[#allocation3 + $0x80] sm:$0xff]
        %v2426 = vld [vmem:[#allocation3 + $0x88] sm:$0xff]
        %v2427 = vld [vmem:[#allocation3 + $0x90] sm:$0xff]
        %v2428 = vld [vmem:[#allocation3 + $0x98] sm:$0xff]
        %v2429 = vld [vmem:[#allocation3 + $0xa0] sm:$0xff]
        %v2430 = vld [vmem:[#allocation3 + $0xa8] sm:$0xff]
        %v2431 = vld [vmem:[#allocation3 + $0xb0] sm:$0xff]
        %v2432 = vld [vmem:[#allocation3 + $0xb8] sm:$0xff]
        %v2433 = vld [vmem:[#allocation3 + $0xc0] sm:$0xff]
        %v2434 = vld [vmem:[#allocation3 + $0xc8] sm:$0xff]
        %v2435 = vld [vmem:[#allocation3 + $0xd0] sm:$0xff]
        %v2436 = vld [vmem:[#allocation3 + $0xd8] sm:$0xff]
        %v2437 = vld [vmem:[#allocation3 + $0xe0] sm:$0xff]
        %v2438 = vld [vmem:[#allocation3 + $0xe8] sm:$0xff]
        %v2439 = vld [vmem:[#allocation3 + $0xf0] sm:$0xff]
        %v2440 = vld [vmem:[#allocation3 + $0xf8] sm:$0xff]
        %v2441 = vrcp.pop %v2409
        %v2442 = vrcp.pop %v2410
        %v2443 = vrcp.pop %v2411
        %v2444 = vrcp.pop %v2412
        %v2445 = vrcp.pop %v2413
        %v2446 = vrcp.pop %v2414
        %v2447 = vrcp.pop %v2415
        %v2448 = vrcp.pop %v2416
        %v2449 = vrcp.pop %v2417
        %v2450 = vrcp.pop %v2418
        %v2451 = vrcp.pop %v2419
        %v2452 = vrcp.pop %v2420
        %v2453 = vrcp.pop %v2421
        %v2454 = vrcp.pop %v2422
        %v2455 = vrcp.pop %v2423
        %v2456 = vrcp.pop %v2424
        %v2457 = vrcp.pop %v2425
        %v2458 = vrcp.pop %v2426
        %v2459 = vrcp.pop %v2427
        %v2460 = vrcp.pop %v2428
        %v2461 = vrcp.pop %v2429
        %v2462 = vrcp.pop %v2430
        %v2463 = vrcp.pop %v2431
        %v2464 = vrcp.pop %v2432
        %v2465 = vrcp.pop %v2433
        %v2466 = vrcp.pop %v2434
        %v2467 = vrcp.pop %v2435
        %v2468 = vrcp.pop %v2436
        %v2469 = vrcp.pop %v2437
        %v2470 = vrcp.pop %v2438
        %v2471 = vrcp.pop %v2439
        %v2472 = vrcp.pop %v2440
        %v2473 = vld [vmem:[#allocation4] sm:$0xff]
        %v2474 = vld [vmem:[#allocation4 + $0x8] sm:$0xff]
        %v2475 = vld [vmem:[#allocation4 + $0x10] sm:$0xff]
        %v2476 = vld [vmem:[#allocation4 + $0x18] sm:$0xff]
        %v2477 = vld [vmem:[#allocation4 + $0x20] sm:$0xff]
        %v2478 = vld [vmem:[#allocation4 + $0x28] sm:$0xff]
        %v2479 = vld [vmem:[#allocation4 + $0x30] sm:$0xff]
        %v2480 = vld [vmem:[#allocation4 + $0x38] sm:$0xff]
        %v2481 = vld [vmem:[#allocation4 + $0x40] sm:$0xff]
        %v2482 = vld [vmem:[#allocation4 + $0x48] sm:$0xff]
        %v2483 = vld [vmem:[#allocation4 + $0x50] sm:$0xff]
        %v2484 = vld [vmem:[#allocation4 + $0x58] sm:$0xff]
        %v2485 = vld [vmem:[#allocation4 + $0x60] sm:$0xff]
        %v2486 = vld [vmem:[#allocation4 + $0x68] sm:$0xff]
        %v2487 = vld [vmem:[#allocation4 + $0x70] sm:$0xff]
        %v2488 = vld [vmem:[#allocation4 + $0x78] sm:$0xff]
        %v2489 = vld [vmem:[#allocation4 + $0x80] sm:$0xff]
        %v2490 = vld [vmem:[#allocation4 + $0x88] sm:$0xff]
        %v2491 = vld [vmem:[#allocation4 + $0x90] sm:$0xff]
        %v2492 = vld [vmem:[#allocation4 + $0x98] sm:$0xff]
        %v2493 = vld [vmem:[#allocation4 + $0xa0] sm:$0xff]
        %v2494 = vld [vmem:[#allocation4 + $0xa8] sm:$0xff]
        %v2495 = vld [vmem:[#allocation4 + $0xb0] sm:$0xff]
        %v2496 = vld [vmem:[#allocation4 + $0xb8] sm:$0xff]
        %v2497 = vld [vmem:[#allocation4 + $0xc0] sm:$0xff]
        %v2498 = vld [vmem:[#allocation4 + $0xc8] sm:$0xff]
        %v2499 = vld [vmem:[#allocation4 + $0xd0] sm:$0xff]
        %v2500 = vld [vmem:[#allocation4 + $0xd8] sm:$0xff]
        %v2501 = vld [vmem:[#allocation4 + $0xe0] sm:$0xff]
        %v2502 = vld [vmem:[#allocation4 + $0xe8] sm:$0xff]
        %v2503 = vld [vmem:[#allocation4 + $0xf0] sm:$0xff]
        %v2504 = vld [vmem:[#allocation4 + $0xf8] sm:$0xff]
        %2506 = vset.pattern.permute.xlu0 0
        %2507 = vperm.xlu0 %2506, %v2441
        %v2508 = vpop.permute.xlu0 %2507
        %2511 = vset.pattern.permute.xlu0 0
        %2512 = vperm.xlu0 %2511, %v2442
        %v2513 = vpop.permute.xlu0 %2512
        %2516 = vset.pattern.permute.xlu0 0
        %2517 = vperm.xlu0 %2516, %v2443
        %v2518 = vpop.permute.xlu0 %2517
        %2521 = vset.pattern.permute.xlu0 0
        %2522 = vperm.xlu0 %2521, %v2444
        %v2523 = vpop.permute.xlu0 %2522
        %2526 = vset.pattern.permute.xlu0 0
        %2527 = vperm.xlu0 %2526, %v2445
        %v2528 = vpop.permute.xlu0 %2527
        %2531 = vset.pattern.permute.xlu0 0
        %2532 = vperm.xlu0 %2531, %v2446
        %v2533 = vpop.permute.xlu0 %2532
        %2536 = vset.pattern.permute.xlu0 0
        %2537 = vperm.xlu0 %2536, %v2447
        %v2538 = vpop.permute.xlu0 %2537
        %2541 = vset.pattern.permute.xlu0 0
        %2542 = vperm.xlu0 %2541, %v2448
        %v2543 = vpop.permute.xlu0 %2542
        %2546 = vset.pattern.permute.xlu0 0
        %2547 = vperm.xlu0 %2546, %v2449
        %v2548 = vpop.permute.xlu0 %2547
        %2551 = vset.pattern.permute.xlu0 0
        %2552 = vperm.xlu0 %2551, %v2450
        %v2553 = vpop.permute.xlu0 %2552
        %2556 = vset.pattern.permute.xlu0 0
        %2557 = vperm.xlu0 %2556, %v2451
        %v2558 = vpop.permute.xlu0 %2557
        %2561 = vset.pattern.permute.xlu0 0
        %2562 = vperm.xlu0 %2561, %v2452
        %v2563 = vpop.permute.xlu0 %2562
        %2566 = vset.pattern.permute.xlu0 0
        %2567 = vperm.xlu0 %2566, %v2453
        %v2568 = vpop.permute.xlu0 %2567
        %2571 = vset.pattern.permute.xlu0 0
        %2572 = vperm.xlu0 %2571, %v2454
        %v2573 = vpop.permute.xlu0 %2572
        %2576 = vset.pattern.permute.xlu0 0
        %2577 = vperm.xlu0 %2576, %v2455
        %v2578 = vpop.permute.xlu0 %2577
        %2581 = vset.pattern.permute.xlu0 0
        %2582 = vperm.xlu0 %2581, %v2456
        %v2583 = vpop.permute.xlu0 %2582
        %2586 = vset.pattern.permute.xlu0 0
        %2587 = vperm.xlu0 %2586, %v2457
        %v2588 = vpop.permute.xlu0 %2587
        %2591 = vset.pattern.permute.xlu0 0
        %2592 = vperm.xlu0 %2591, %v2458
        %v2593 = vpop.permute.xlu0 %2592
        %2596 = vset.pattern.permute.xlu0 0
        %2597 = vperm.xlu0 %2596, %v2459
        %v2598 = vpop.permute.xlu0 %2597
        %2601 = vset.pattern.permute.xlu0 0
        %2602 = vperm.xlu0 %2601, %v2460
        %v2603 = vpop.permute.xlu0 %2602
        %2606 = vset.pattern.permute.xlu0 0
        %2607 = vperm.xlu0 %2606, %v2461
        %v2608 = vpop.permute.xlu0 %2607
        %2611 = vset.pattern.permute.xlu0 0
        %2612 = vperm.xlu0 %2611, %v2462
        %v2613 = vpop.permute.xlu0 %2612
        %2616 = vset.pattern.permute.xlu0 0
        %2617 = vperm.xlu0 %2616, %v2463
        %v2618 = vpop.permute.xlu0 %2617
        %2621 = vset.pattern.permute.xlu0 0
        %2622 = vperm.xlu0 %2621, %v2464
        %v2623 = vpop.permute.xlu0 %2622
        %2626 = vset.pattern.permute.xlu0 0
        %2627 = vperm.xlu0 %2626, %v2465
        %v2628 = vpop.permute.xlu0 %2627
        %2631 = vset.pattern.permute.xlu0 0
        %2632 = vperm.xlu0 %2631, %v2466
        %v2633 = vpop.permute.xlu0 %2632
        %2636 = vset.pattern.permute.xlu0 0
        %2637 = vperm.xlu0 %2636, %v2467
        %v2638 = vpop.permute.xlu0 %2637
        %2641 = vset.pattern.permute.xlu0 0
        %2642 = vperm.xlu0 %2641, %v2468
        %v2643 = vpop.permute.xlu0 %2642
        %2646 = vset.pattern.permute.xlu0 0
        %2647 = vperm.xlu0 %2646, %v2469
        %v2648 = vpop.permute.xlu0 %2647
        %2651 = vset.pattern.permute.xlu0 0
        %2652 = vperm.xlu0 %2651, %v2470
        %v2653 = vpop.permute.xlu0 %2652
        %2656 = vset.pattern.permute.xlu0 0
        %2657 = vperm.xlu0 %2656, %v2471
        %v2658 = vpop.permute.xlu0 %2657
        %2661 = vset.pattern.permute.xlu0 0
        %2662 = vperm.xlu0 %2661, %v2472
        %v2663 = vpop.permute.xlu0 %2662
        %v2665 = vmul.f32 %v2473, %v2508
        %v2666 = vmul.f32 %v2474, %v2513
        %v2667 = vmul.f32 %v2475, %v2518
        %v2668 = vmul.f32 %v2476, %v2523
        %v2669 = vmul.f32 %v2477, %v2528
        %v2670 = vmul.f32 %v2478, %v2533
        %v2671 = vmul.f32 %v2479, %v2538
        %v2672 = vmul.f32 %v2480, %v2543
        %v2673 = vmul.f32 %v2481, %v2548
        %v2674 = vmul.f32 %v2482, %v2553
        %v2675 = vmul.f32 %v2483, %v2558
        %v2676 = vmul.f32 %v2484, %v2563
        %v2677 = vmul.f32 %v2485, %v2568
        %v2678 = vmul.f32 %v2486, %v2573
        %v2679 = vmul.f32 %v2487, %v2578
        %v2680 = vmul.f32 %v2488, %v2583
        %v2681 = vmul.f32 %v2489, %v2588
        %v2682 = vmul.f32 %v2490, %v2593
        %v2683 = vmul.f32 %v2491, %v2598
        %v2684 = vmul.f32 %v2492, %v2603
        %v2685 = vmul.f32 %v2493, %v2608
        %v2686 = vmul.f32 %v2494, %v2613
        %v2687 = vmul.f32 %v2495, %v2618
        %v2688 = vmul.f32 %v2496, %v2623
        %v2689 = vmul.f32 %v2497, %v2628
        %v2690 = vmul.f32 %v2498, %v2633
        %v2691 = vmul.f32 %v2499, %v2638
        %v2692 = vmul.f32 %v2500, %v2643
        %v2693 = vmul.f32 %v2501, %v2648
        %v2694 = vmul.f32 %v2502, %v2653
        %v2695 = vmul.f32 %v2503, %v2658
        %v2696 = vmul.f32 %v2504, %v2663
        %2697 = vst.msk [vmem:[%s346] sm:$0xff] %vm546, %v2665
        %2698 = vst.msk [vmem:[%s346 + $0x8] sm:$0xff] %vm546, %v2666
        %2699 = vst.msk [vmem:[%s346 + $0x10] sm:$0xff] %vm546, %v2667
        %2700 = vst.msk [vmem:[%s346 + $0x18] sm:$0xff] %vm546, %v2668
        %2701 = vst.msk [vmem:[%s346 + $0x20] sm:$0xff] %vm546, %v2669
        %2702 = vst.msk [vmem:[%s346 + $0x28] sm:$0xff] %vm546, %v2670
        %2703 = vst.msk [vmem:[%s346 + $0x30] sm:$0xff] %vm546, %v2671
        %2704 = vst.msk [vmem:[%s346 + $0x38] sm:$0xff] %vm546, %v2672
        %2705 = vst.msk [vmem:[%s346 + $0x40] sm:$0xff] %vm546, %v2673
        %2706 = vst.msk [vmem:[%s346 + $0x48] sm:$0xff] %vm546, %v2674
        %2707 = vst.msk [vmem:[%s346 + $0x50] sm:$0xff] %vm546, %v2675
        %2708 = vst.msk [vmem:[%s346 + $0x58] sm:$0xff] %vm546, %v2676
        %2709 = vst.msk [vmem:[%s346 + $0x60] sm:$0xff] %vm546, %v2677
        %2710 = vst.msk [vmem:[%s346 + $0x68] sm:$0xff] %vm546, %v2678
        %2711 = vst.msk [vmem:[%s346 + $0x70] sm:$0xff] %vm546, %v2679
        %2712 = vst.msk [vmem:[%s346 + $0x78] sm:$0xff] %vm546, %v2680
        %2713 = vst.msk [vmem:[%s346 + $0x80] sm:$0xff] %vm546, %v2681
        %2714 = vst.msk [vmem:[%s346 + $0x88] sm:$0xff] %vm546, %v2682
        %2715 = vst.msk [vmem:[%s346 + $0x90] sm:$0xff] %vm546, %v2683
        %2716 = vst.msk [vmem:[%s346 + $0x98] sm:$0xff] %vm546, %v2684
        %2717 = vst.msk [vmem:[%s346 + $0xa0] sm:$0xff] %vm546, %v2685
        %2718 = vst.msk [vmem:[%s346 + $0xa8] sm:$0xff] %vm546, %v2686
        %2719 = vst.msk [vmem:[%s346 + $0xb0] sm:$0xff] %vm546, %v2687
        %2720 = vst.msk [vmem:[%s346 + $0xb8] sm:$0xff] %vm546, %v2688
        %2721 = vst.msk [vmem:[%s346 + $0xc0] sm:$0xff] %vm546, %v2689
        %2722 = vst.msk [vmem:[%s346 + $0xc8] sm:$0xff] %vm546, %v2690
        %2723 = vst.msk [vmem:[%s346 + $0xd0] sm:$0xff] %vm546, %v2691
        %2724 = vst.msk [vmem:[%s346 + $0xd8] sm:$0xff] %vm546, %v2692
        %2725 = vst.msk [vmem:[%s346 + $0xe0] sm:$0xff] %vm546, %v2693
        %2726 = vst.msk [vmem:[%s346 + $0xe8] sm:$0xff] %vm546, %v2694
        %2727 = vst.msk [vmem:[%s346 + $0xf0] sm:$0xff] %vm546, %v2695
        %2728 = vst.msk [vmem:[%s346 + $0xf8] sm:$0xff] %vm546, %v2696
      $region40: #{tpu_custom_call.1} parent=31 // pred_fallthru
        _
      %s2729 = smul.u32 32, %s22
      %p2730 = scmp.lt.s32.totalorder %s20, 1
      %s2731 = scalar_select %p2730, %s20, 1
      %p2732 = scmp.lt.s32.totalorder %s21, 3
      %s2733 = scalar_select %p2732, %s21, 3
      %p2734 = scmp.lt.s32.totalorder %s2729, 31
      %s2735 = scalar_select %p2734, %s2729, 31
      %s2736 = smul.addr %s2733, 32
      %s2737 = sadd.s32 %s2735, %s2736
      %s2738 = smul.addr %s2731, 128
      %s2739 = sadd.s32 %s2737, %s2738
      %s2740 = smul.addr %s2739, 8
      %s2741 = scalar_lea.vmem %s3, %s2740
      // Predicated region
      $region41: #{tpu_custom_call.1} parent=31 // pred_check
        %p2742 = pneg %p152
      $region42: #{tpu_custom_call.1} parent=31 // pred_check_branch
        %2744 = sbr.rel (%p2742) target = $region44
      $region43: #{tpu_custom_call.1} parent=31 // pred_region
        %s2745 = smul.u32 32, %s22
      $region44: #{tpu_custom_call.1} parent=31 // pred_fallthru
        _
    $region32: #{tpu_custom_call.1} parent=5 // pred_fallthru
      _
    %p2746 = scmp.le.s32.totalorder 2, %s9
    // Predicated region
    $region45: #{tpu_custom_call.1} parent=5 // pred_check
      %p2747 = pneg %p2746
    $region46: #{tpu_custom_call.1} parent=5 // pred_check_branch
      %2749 = sbr.rel (%p2747) target = $region48
    $region47: #{tpu_custom_call.1} parent=5 // pred_region
      %s2750 = ssub.s32 %s9, 2
      // Predicated region
      $region49: #{tpu_custom_call.1} parent=47 // pred_check
        %p2751 = pneg %p158
      $region50: #{tpu_custom_call.1} parent=47 // pred_check_branch
        %2753 = sbr.rel (%p2751) target = $region52
      $region51: #{tpu_custom_call.1} parent=47 // pred_region
        %s2754 = smul.u32 32, %s26
        %p2755 = scmp.lt.s32.totalorder %s24, 1
        %s2756 = scalar_select %p2755, %s24, 1
        %p2757 = scmp.lt.s32.totalorder %s25, 3
        %s2758 = scalar_select %p2757, %s25, 3
        %p2759 = scmp.lt.s32.totalorder %s2754, 31
        %s2760 = scalar_select %p2759, %s2754, 31
        %s2761 = smul.addr %s2758, 32
        %s2762 = sadd.s32 %s2760, %s2761
        %s2763 = smul.addr %s2756, 128
        %s2764 = sadd.s32 %s2762, %s2763
        %s2765 = smul.addr %s2764, 8
        %s2766 = scalar_lea.vmem %s3, %s2765
      $region52: #{tpu_custom_call.1} parent=47 // pred_fallthru
        _
    $region48: #{tpu_custom_call.1} parent=5 // pred_fallthru
      _
  $region6: #{tpu_custom_call.1} parent=0 // loop_footer
    %s13 = sadd.s32 1, %s9
  $region7: #{tpu_custom_call.1} parent=0 // loop_footer_branch
    %8 = sbr.rel target = $region3
  $region8: #{tpu_custom_call.1} parent=0 // loop_exit
    _

</llo_original>
